<compile_context>
chip_gen: v7x
topology: tpu7x:2x2x1
jax: 0.10.0
libtpu: 0.0.40
codegen_flags: <defaults>
</compile_context>

<pallas_src>
import functools

import numpy as np

import jax
import jax.numpy as jnp
from jax import lax
from jax.experimental import pallas as pl
from jax.experimental.pallas import tpu as pltpu


_VMEM_LIMIT_BYTES = 32 * 1024 * 1024  # safe on v7x (64 MiB phys) and v5e/v6e


def _round_up(v, m):
    return (v + m - 1) // m * m


def _pad_to(a, shape):
    return jnp.pad(a, [(0, t - s) for s, t in zip(a.shape, shape)])


def _pick_node_tile(n, target):
    """Largest multiple of 8 that divides n and is <= target (else n)."""
    if n <= target:
        return n
    for t in range(min(target, n), 7, -1):
        if n % t == 0 and t % 8 == 0:
            return t
    return n


# ---------------------------------------------------------------------------
# Pass 1: per node-tile fused fc + QKV projection; accumulate global statistics
# (unnormalized K^T V, sum(K), ||Q||^2, ||K||^2) and store the bf16 hidden slab.
# ---------------------------------------------------------------------------
def _pass1_kernel(x_ref, fcw_ref, fcb_ref, wqkv_w_ref, wqkv_b_ref,
                  h_ref, ktv_ref, ksum_ref, qssq_ref, kssq_ref,
                  *, hd_pad):
    @pl.when(pl.program_id(1) == 0)
    def _init():
        ktv_ref[...] = jnp.zeros_like(ktv_ref)
        ksum_ref[...] = jnp.zeros_like(ksum_ref)
        qssq_ref[...] = jnp.zeros_like(qssq_ref)
        kssq_ref[...] = jnp.zeros_like(kssq_ref)

    x = x_ref[...]                                                   # [NT, Cin] bf16
    h = jnp.dot(x, fcw_ref[...], preferred_element_type=jnp.float32)
    h = jnp.maximum(h + fcb_ref[...], 0.0).astype(jnp.bfloat16)      # [NT, Hp]
    h_ref[...] = h                                                    # only slab stored

    # Fused q/k/v projection: one wide MXU matmul.
    qkv = jnp.dot(h, wqkv_w_ref[...], preferred_element_type=jnp.float32)
    qkv = qkv + wqkv_b_ref[...]                                      # [NT, 3*HDp] f32

    q = qkv[:, :hd_pad]                                              # 128-aligned slices
    k = qkv[:, hd_pad:2 * hd_pad]
    v = qkv[:, 2 * hd_pad:]

    kb = k.astype(jnp.bfloat16)
    vb = v.astype(jnp.bfloat16)

    # Unnormalized statistics; global-norm scaling is deferred to pass 2.
    ktv_ref[...] += lax.dot_general(kb, vb, (((0,), (0,)), ((), ())),
                                    preferred_element_type=jnp.float32)   # [HDp, HDp]
    ksum_ref[...] += jnp.sum(k, axis=0, keepdims=True)                     # [1, HDp]
    qssq_ref[...] += jnp.sum(jnp.sum(q * q, axis=-1, keepdims=True),
                             axis=0, keepdims=True)                        # [1, 1]
    kssq_ref[...] += jnp.sum(jnp.sum(k * k, axis=-1, keepdims=True),
                             axis=0, keepdims=True)                        # [1, 1]


# ---------------------------------------------------------------------------
# Pass 2: per node-tile attention output using the pass-1 accumulators.
# q/v are re-projected from the stored hidden slab (cheaper than storing them).
# No per-head loop: block-diagonal head mask + head-mean matmul keep everything
# as 128-lane-wide MXU ops.
# ---------------------------------------------------------------------------
def _pass2_kernel(h_ref, wqv_w_ref, wqv_b_ref, ktv_ref, ksum_ref,
                  qssq_ref, kssq_ref, mask_ref, mean_ref, out_ref,
                  *, hd_pad, n_nodes):
    # Recompute q / v from the hidden slab with one fused MXU matmul.
    qv = jnp.dot(h_ref[...], wqv_w_ref[...], preferred_element_type=jnp.float32)
    qv = qv + wqv_b_ref[...]                                          # [NT, 2*HDp] f32
    q = qv[:, :hd_pad]
    v = qv[:, hd_pad:]                                                # f32, no round-trip

    # Deferred global-norm scaling: 1 / (||q||_F * ||k||_F), single rsqrt (EUP).
    inv_norm = lax.rsqrt(qssq_ref[...] * kssq_ref[...])              # [1, 1]

    mask = mask_ref[...]                                             # [HDp, HDp] f32
    kvs = (ktv_ref[...] * mask * inv_norm).astype(jnp.bfloat16)      # per-head k^T v
    ksum_s = ksum_ref[...] * inv_norm                                # [1, HDp]

    qb = q.astype(jnp.bfloat16)
    num = jnp.dot(qb, kvs, preferred_element_type=jnp.float32) + n_nodes * v

    prod = (q * ksum_s).astype(jnp.bfloat16)                         # q * sum(k)
    den = jnp.dot(prod, mask.astype(jnp.bfloat16),
                  preferred_element_type=jnp.float32) + n_nodes      # per-head denom,
                                                                     # broadcast to lanes
    ratio = num * pl.reciprocal(den, approx=True)                    # [NT, HDp]

    # Mean over heads via a tiny matmul; output is lane-dense (Dp = 128 lanes).
    out_ref[...] = jnp.dot(ratio.astype(jnp.bfloat16), mean_ref[...],
                           preferred_element_type=jnp.float32)


def transconv_forward(x, params, *, num_heads, out_ch, node_tile=512):
    B, N, Cin = x.shape
    H = params["fc_w"].shape[1]
    HD = num_heads * out_ch

    Hp = _round_up(H, 128)
    HDp = _round_up(HD, 128)
    Dp = _round_up(out_ch, 128)

    nt = _pick_node_tile(N, node_tile)
    T = N // nt

    # --- wrapper-level layout plumbing (padding / fusion, done once) ---
    fc_w = _pad_to(params["fc_w"], (Cin, Hp)).astype(jnp.bfloat16)
    fc_b = _pad_to(params["fc_b"], (1, Hp)).astype(jnp.float32)
    wqkv_w = jnp.concatenate(
        [_pad_to(params[k], (Hp, HDp)) for k in ("wq_w", "wk_w", "wv_w")],
        axis=1).astype(jnp.bfloat16)
    wqkv_b = jnp.concatenate(
        [_pad_to(params[k], (1, HDp)) for k in ("wq_b", "wk_b", "wv_b")],
        axis=1).astype(jnp.float32)
    wqv_w = jnp.concatenate(
        [_pad_to(params[k], (Hp, HDp)) for k in ("wq_w", "wv_w")],
        axis=1).astype(jnp.bfloat16)
    wqv_b = jnp.concatenate(
        [_pad_to(params[k], (1, HDp)) for k in ("wq_b", "wv_b")],
        axis=1).astype(jnp.float32)

    idx = np.arange(HDp)
    head_of = np.where(idx < HD, idx // out_ch, -1)
    head_mask = ((head_of[:, None] == head_of[None, :])
                 & (head_of[:, None] >= 0)).astype(np.float32)
    head_mask = jnp.asarray(head_mask)                               # [HDp, HDp]

    mean_np = np.zeros((HDp, Dp), np.float32)
    for h_ in range(num_heads):
        mean_np[h_ * out_ch:(h_ + 1) * out_ch, :out_ch] += (
            np.eye(out_ch, dtype=np.float32) / num_heads)
    mean_mat = jnp.asarray(mean_np, jnp.bfloat16)                    # [HDp, Dp]

    x_b = x.astype(jnp.bfloat16)

    full2 = lambda b, n: (0, 0)

    # ------------------------- pass 1 -------------------------
    pass1 = pl.pallas_call(
        functools.partial(_pass1_kernel, hd_pad=HDp),
        out_shape=(
            jax.ShapeDtypeStruct((B, N, Hp), jnp.bfloat16),      # hidden h (lane-padded)
            jax.ShapeDtypeStruct((B, HDp, HDp), jnp.float32),    # K^T V
            jax.ShapeDtypeStruct((B, 1, HDp), jnp.float32),      # sum(K)
            jax.ShapeDtypeStruct((B, 1, 1), jnp.float32),        # ||Q||^2
            jax.ShapeDtypeStruct((B, 1, 1), jnp.float32),        # ||K||^2
        ),
        grid_spec=pltpu.PrefetchScalarGridSpec(
            num_scalar_prefetch=0,
            grid=(B, T),
            in_specs=[
                pl.BlockSpec((pl.Squeezed(), nt, Cin), lambda b, n: (b, n, 0)),
                pl.BlockSpec((Cin, Hp), full2),
                pl.BlockSpec((1, Hp), full2),
                pl.BlockSpec((Hp, 3 * HDp), full2),
                pl.BlockSpec((1, 3 * HDp), full2),
            ],
            out_specs=(
                pl.BlockSpec((pl.Squeezed(), nt, Hp), lambda b, n: (b, n, 0)),
                pl.BlockSpec((pl.Squeezed(), HDp, HDp), lambda b, n: (b, 0, 0)),
                pl.BlockSpec((pl.Squeezed(), 1, HDp), lambda b, n: (b, 0, 0)),
                pl.BlockSpec((pl.Squeezed(), 1, 1), lambda b, n: (b, 0, 0)),
                pl.BlockSpec((pl.Squeezed(), 1, 1), lambda b, n: (b, 0, 0)),
            ),
        ),
        compiler_params=pltpu.CompilerParams(
            dimension_semantics=("parallel", "arbitrary"),
            vmem_limit_bytes=_VMEM_LIMIT_BYTES,
        ),
    )
    h_st, ktv, ksum, qssq, kssq = pass1(x_b, fc_w, fc_b, wqkv_w, wqkv_b)

    # ------------------------- pass 2 -------------------------
    out_pad = pl.pallas_call(
        functools.partial(_pass2_kernel, hd_pad=HDp, n_nodes=float(N)),
        out_shape=jax.ShapeDtypeStruct((B, N, Dp), jnp.float32),
        grid_spec=pltpu.PrefetchScalarGridSpec(
            num_scalar_prefetch=0,
            grid=(B, T),
            in_specs=[
                pl.BlockSpec((pl.Squeezed(), nt, Hp), lambda b, n: (b, n, 0)),
                pl.BlockSpec((Hp, 2 * HDp), full2),
                pl.BlockSpec((1, 2 * HDp), full2),
                pl.BlockSpec((pl.Squeezed(), HDp, HDp), lambda b, n: (b, 0, 0)),
                pl.BlockSpec((pl.Squeezed(), 1, HDp), lambda b, n: (b, 0, 0)),
                pl.BlockSpec((pl.Squeezed(), 1, 1), lambda b, n: (b, 0, 0)),
                pl.BlockSpec((pl.Squeezed(), 1, 1), lambda b, n: (b, 0, 0)),
                pl.BlockSpec((HDp, HDp), full2),
                pl.BlockSpec((HDp, Dp), full2),
            ],
            out_specs=pl.BlockSpec((pl.Squeezed(), nt, Dp), lambda b, n: (b, n, 0)),
        ),
        compiler_params=pltpu.CompilerParams(
            # Both axes parallel: N-tiles feed both TensorCores on v7x even if B<2.
            dimension_semantics=("parallel", "parallel"),
            vmem_limit_bytes=_VMEM_LIMIT_BYTES,
        ),
    )(h_st, wqv_w, wqv_b, ktv, ksum, qssq, kssq, head_mask, mean_mat)

    return out_pad[:, :, :out_ch]


def transconv_reference(x, params, *, num_heads, out_ch):
    """Pure-JAX (f32) reference mirroring the PyTorch module."""
    h = jax.nn.relu(x @ params["fc_w"] + params["fc_b"])

    def per_batch(hb):
        q = (hb @ params["wq_w"] + params["wq_b"]).reshape(-1, num_heads, out_ch)
        k = (hb @ params["wk_w"] + params["wk_b"]).reshape(-1, num_heads, out_ch)
        v = (hb @ params["wv_w"] + params["wv_b"]).reshape(-1, num_heads, out_ch)
        q = q / jnp.linalg.norm(q)
        k = k / jnp.linalg.norm(k)
        n = q.shape[0]
        kvs = jnp.einsum("lhm,lhd->hmd", k, v)
        num = jnp.einsum("nhm,hmd->nhd", q, kvs) + n * v
        ks_sum = jnp.einsum("lhm->hm", k)
        denom = jnp.einsum("nhm,hm->nh", q, ks_sum)[..., None] + n
        return (num / denom).mean(axis=1)

    return jax.vmap(per_batch)(h)


def init_params(key, in_channels, hidden_channels, num_heads):
    HD = hidden_channels * num_heads
    ks = jax.random.split(key, 8)
    scale = 0.1
    return {
        "fc_w": scale * jax.random.normal(ks[0], (in_channels, hidden_channels), jnp.float32),
        "fc_b": scale * jax.random.normal(ks[1], (1, hidden_channels), jnp.float32),
        "wq_w": scale * jax.random.normal(ks[2], (hidden_channels, HD), jnp.float32),
        "wq_b": scale * jax.random.normal(ks[3], (1, HD), jnp.float32),
        "wk_w": scale * jax.random.normal(ks[4], (hidden_channels, HD), jnp.float32),
        "wk_b": scale * jax.random.normal(ks[5], (1, HD), jnp.float32),
        "wv_w": scale * jax.random.normal(ks[6], (hidden_channels, HD), jnp.float32),
        "wv_b": scale * jax.random.normal(ks[7], (1, HD), jnp.float32),
    }


if __name__ == "__main__":
    B, N, C_in = 2, 256, 8      # small, but multi-tile (node_tile=128 -> 2 tiles)
    hidden = 32
    num_heads = 2
    out_ch = hidden             # TransConvLayer uses out_channels == hidden_channels

    key = jax.random.PRNGKey(0)
    kx, kp = jax.random.split(key)
    x = jax.random.normal(kx, (B, N, C_in), jnp.float32)
    params = init_params(kp, C_in, hidden, num_heads)

    out = transconv_forward(x, params, num_heads=num_heads, out_ch=out_ch,
                            node_tile=128)
    out = jax.block_until_ready(out)

    ref = jax.block_until_ready(
        transconv_reference(x, params, num_heads=num_heads, out_ch=out_ch))

    assert out.shape == (B, N, out_ch), out.shape
    # bf16 MXU inputs + approx reciprocal -> compare with a bf16-appropriate tolerance.
    assert jnp.allclose(out, ref, rtol=2e-2, atol=2e-2), \
        float(jnp.max(jnp.abs(out - ref)))

    print("KERNEL_OK")
</pallas_src>

<mosaic_0001>
module attributes {stable_mosaic.version = 11 : i64} {
  func.func @_pass1_kernel(%arg0: i32, %arg1: i32, %arg2: memref<1x128x8xbf16, #tpu.memory_space<vmem>>, %arg3: memref<8x128xbf16, #tpu.memory_space<vmem>>, %arg4: memref<1x128xf32, #tpu.memory_space<vmem>>, %arg5: memref<128x384xbf16, #tpu.memory_space<vmem>>, %arg6: memref<1x384xf32, #tpu.memory_space<vmem>>, %arg7: memref<1x128x128xbf16, #tpu.memory_space<vmem>>, %arg8: memref<1x128x128xf32, #tpu.memory_space<vmem>>, %arg9: memref<1x1x128xf32, #tpu.memory_space<vmem>>, %arg10: memref<1x1x1xf32, #tpu.memory_space<vmem>>, %arg11: memref<1x1x1xf32, #tpu.memory_space<vmem>>) attributes {dimension_semantics = [#tpu.dimension_semantics<parallel>, #tpu.dimension_semantics<arbitrary>], iteration_bounds = array<i64: 2, 2>, scalar_prefetch = 0 : i64, scratch_operands = 0 : i64, tpu.core_type = #tpu.core_type<tc>, window_params = [{transform_indices = @transform_0, window_bounds = array<i64: 1, 128, 8>}, {pipeline_mode = #tpu.pipeline_mode<synchronous>, transform_indices = @transform_1, window_bounds = array<i64: 8, 128>}, {pipeline_mode = #tpu.pipeline_mode<synchronous>, transform_indices = @transform_2, window_bounds = array<i64: 1, 128>}, {pipeline_mode = #tpu.pipeline_mode<synchronous>, transform_indices = @transform_3, window_bounds = array<i64: 128, 384>}, {pipeline_mode = #tpu.pipeline_mode<synchronous>, transform_indices = @transform_4, window_bounds = array<i64: 1, 384>}, {transform_indices = @transform_5, window_bounds = array<i64: 1, 128, 128>}, {transform_indices = @transform_6, window_bounds = array<i64: 1, 128, 128>}, {transform_indices = @transform_7, window_bounds = array<i64: 1, 1, 128>}, {transform_indices = @transform_8, window_bounds = array<i64: 1, 1, 1>}, {transform_indices = @transform_9, window_bounds = array<i64: 1, 1, 1>}]} {
    %c0_i32 = arith.constant 0 : i32
    %0 = arith.cmpi eq, %arg1, %c0_i32 : i32
    %1 = arith.extui %0 : i1 to i32
    %c0_i32_0 = arith.constant 0 : i32
    %2 = arith.cmpi ne, %1, %c0_i32_0 : i32
    scf.if %2 {
      %cst_46 = arith.constant 0.000000e+00 : f32
      %63 = vector.broadcast %cst_46 : f32 to vector<128x128xf32>
      %c0_47 = arith.constant 0 : index
      %c0_48 = arith.constant 0 : index
      %c0_49 = arith.constant 0 : index
      %64 = vector.load %arg8[%c0_47, %c0_48, %c0_49] : memref<1x128x128xf32, #tpu.memory_space<vmem>>, vector<1x128x128xf32>
      %65 = vector.shape_cast %64 : vector<1x128x128xf32> to vector<128x128xf32>
      %66 = vector.shape_cast %63 : vector<128x128xf32> to vector<1x128x128xf32>
      tpu.vector_store %arg8[%c0_47, %c0_48, %c0_49], %66 {strides = array<i32>} : memref<1x128x128xf32, #tpu.memory_space<vmem>>, vector<1x128x128xf32>,
      %cst_50 = arith.constant 0.000000e+00 : f32
      %67 = vector.broadcast %cst_50 : f32 to vector<1x128xf32>
      %c0_51 = arith.constant 0 : index
      %c0_52 = arith.constant 0 : index
      %c0_53 = arith.constant 0 : index
      %68 = vector.load %arg9[%c0_51, %c0_52, %c0_53] : memref<1x1x128xf32, #tpu.memory_space<vmem>>, vector<1x1x128xf32>
      %69 = vector.shape_cast %68 : vector<1x1x128xf32> to vector<1x128xf32>
      %70 = vector.shape_cast %67 : vector<1x128xf32> to vector<1x1x128xf32>
      tpu.vector_store %arg9[%c0_51, %c0_52, %c0_53], %70 {strides = array<i32>} : memref<1x1x128xf32, #tpu.memory_space<vmem>>, vector<1x1x128xf32>,
      %cst_54 = arith.constant 0.000000e+00 : f32
      %71 = vector.broadcast %cst_54 : f32 to vector<1x1xf32>
      %c0_55 = arith.constant 0 : index
      %c0_56 = arith.constant 0 : index
      %c0_57 = arith.constant 0 : index
      %72 = vector.load %arg10[%c0_55, %c0_56, %c0_57] : memref<1x1x1xf32, #tpu.memory_space<vmem>>, vector<1x1x1xf32>
      %73 = vector.shape_cast %72 : vector<1x1x1xf32> to vector<1x1xf32>
      %74 = vector.shape_cast %71 : vector<1x1xf32> to vector<1x1x1xf32>
      tpu.vector_store %arg10[%c0_55, %c0_56, %c0_57], %74 {strides = array<i32>} : memref<1x1x1xf32, #tpu.memory_space<vmem>>, vector<1x1x1xf32>,
      %cst_58 = arith.constant 0.000000e+00 : f32
      %75 = vector.broadcast %cst_58 : f32 to vector<1x1xf32>
      %c0_59 = arith.constant 0 : index
      %c0_60 = arith.constant 0 : index
      %c0_61 = arith.constant 0 : index
      %76 = vector.load %arg11[%c0_59, %c0_60, %c0_61] : memref<1x1x1xf32, #tpu.memory_space<vmem>>, vector<1x1x1xf32>
      %77 = vector.shape_cast %76 : vector<1x1x1xf32> to vector<1x1xf32>
      %78 = vector.shape_cast %75 : vector<1x1xf32> to vector<1x1x1xf32>
      tpu.vector_store %arg11[%c0_59, %c0_60, %c0_61], %78 {strides = array<i32>} : memref<1x1x1xf32, #tpu.memory_space<vmem>>, vector<1x1x1xf32>,
    } else {
    }
    %c0 = arith.constant 0 : index
    %c0_1 = arith.constant 0 : index
    %c0_2 = arith.constant 0 : index
    %3 = vector.load %arg2[%c0, %c0_1, %c0_2] : memref<1x128x8xbf16, #tpu.memory_space<vmem>>, vector<1x128x8xbf16>
    %4 = vector.shape_cast %3 : vector<1x128x8xbf16> to vector<128x8xbf16>
    %c0_3 = arith.constant 0 : index
    %c0_4 = arith.constant 0 : index
    %5 = vector.load %arg3[%c0_3, %c0_4] : memref<8x128xbf16, #tpu.memory_space<vmem>>, vector<8x128xbf16>
    %cst = arith.constant dense<0.000000e+00> : vector<128x128xf32>
    %6 = tpu.matmul %4, %5, %cst {dimension_numbers = #tpu.dot_dimension_numbers<[1], [0], [0], [1], [0, 0, 1, 1], [], []>} : vector<128x8xbf16>, vector<8x128xbf16>, vector<128x128xf32> -> vector<128x128xf32>
    %c0_5 = arith.constant 0 : index
    %c0_6 = arith.constant 0 : index
    %7 = vector.load %arg4[%c0_5, %c0_6] : memref<1x128xf32, #tpu.memory_space<vmem>>, vector<1x128xf32>
    %8 = vector.broadcast %7 : vector<1x128xf32> to vector<128x128xf32>
    %9 = arith.addf %6, %8 : vector<128x128xf32>
    %cst_7 = arith.constant 0.000000e+00 : f32
    %10 = vector.broadcast %cst_7 : f32 to vector<128x128xf32>
    %11 = arith.maximumf %9, %10 : vector<128x128xf32>
    %12 = arith.truncf %11 : vector<128x128xf32> to vector<128x128xbf16>
    %c0_8 = arith.constant 0 : index
    %c0_9 = arith.constant 0 : index
    %c0_10 = arith.constant 0 : index
    %13 = vector.load %arg7[%c0_8, %c0_9, %c0_10] : memref<1x128x128xbf16, #tpu.memory_space<vmem>>, vector<1x128x128xbf16>
    %14 = vector.shape_cast %13 : vector<1x128x128xbf16> to vector<128x128xbf16>
    %15 = vector.shape_cast %12 : vector<128x128xbf16> to vector<1x128x128xbf16>
    tpu.vector_store %arg7[%c0_8, %c0_9, %c0_10], %15 {strides = array<i32>} : memref<1x128x128xbf16, #tpu.memory_space<vmem>>, vector<1x128x128xbf16>,
    %c0_11 = arith.constant 0 : index
    %c0_12 = arith.constant 0 : index
    %16 = vector.load %arg5[%c0_11, %c0_12] : memref<128x384xbf16, #tpu.memory_space<vmem>>, vector<128x384xbf16>
    %cst_13 = arith.constant dense<0.000000e+00> : vector<128x384xf32>
    %17 = tpu.matmul %12, %16, %cst_13 {dimension_numbers = #tpu.dot_dimension_numbers<[1], [0], [0], [1], [0, 0, 1, 1], [], []>} : vector<128x128xbf16>, vector<128x384xbf16>, vector<128x384xf32> -> vector<128x384xf32>
    %c0_14 = arith.constant 0 : index
    %c0_15 = arith.constant 0 : index
    %18 = vector.load %arg6[%c0_14, %c0_15] : memref<1x384xf32, #tpu.memory_space<vmem>>, vector<1x384xf32>
    %19 = vector.broadcast %18 : vector<1x384xf32> to vector<128x384xf32>
    %20 = arith.addf %17, %19 : vector<128x384xf32>
    %21 = vector.extract_strided_slice %20 {offsets = [0, 0], sizes = [128, 128], strides = [1, 1]} : vector<128x384xf32> to vector<128x128xf32>
    %22 = vector.extract_strided_slice %20 {offsets = [0, 128], sizes = [128, 128], strides = [1, 1]} : vector<128x384xf32> to vector<128x128xf32>
    %23 = vector.extract_strided_slice %20 {offsets = [0, 256], sizes = [128, 128], strides = [1, 1]} : vector<128x384xf32> to vector<128x128xf32>
    %24 = arith.truncf %22 : vector<128x128xf32> to vector<128x128xbf16>
    %25 = arith.truncf %23 : vector<128x128xf32> to vector<128x128xbf16>
    %c0_16 = arith.constant 0 : index
    %c0_17 = arith.constant 0 : index
    %c0_18 = arith.constant 0 : index
    %26 = vector.load %arg8[%c0_16, %c0_17, %c0_18] : memref<1x128x128xf32, #tpu.memory_space<vmem>>, vector<1x128x128xf32>
    %27 = vector.shape_cast %26 : vector<1x128x128xf32> to vector<128x128xf32>
    %cst_19 = arith.constant dense<0.000000e+00> : vector<128x128xf32>
    %28 = tpu.matmul %24, %25, %cst_19 {dimension_numbers = #tpu.dot_dimension_numbers<[0], [0], [1], [1], [0, 1, 1, 1], [], []>} : vector<128x128xbf16>, vector<128x128xbf16>, vector<128x128xf32> -> vector<128x128xf32>
    %29 = arith.addf %27, %28 : vector<128x128xf32>
    %c0_20 = arith.constant 0 : index
    %c0_21 = arith.constant 0 : index
    %c0_22 = arith.constant 0 : index
    %30 = vector.load %arg8[%c0_20, %c0_21, %c0_22] : memref<1x128x128xf32, #tpu.memory_space<vmem>>, vector<1x128x128xf32>
    %31 = vector.shape_cast %30 : vector<1x128x128xf32> to vector<128x128xf32>
    %32 = vector.shape_cast %29 : vector<128x128xf32> to vector<1x128x128xf32>
    tpu.vector_store %arg8[%c0_20, %c0_21, %c0_22], %32 {strides = array<i32>} : memref<1x128x128xf32, #tpu.memory_space<vmem>>, vector<1x128x128xf32>,
    %c0_23 = arith.constant 0 : index
    %c0_24 = arith.constant 0 : index
    %c0_25 = arith.constant 0 : index
    %33 = vector.load %arg9[%c0_23, %c0_24, %c0_25] : memref<1x1x128xf32, #tpu.memory_space<vmem>>, vector<1x1x128xf32>
    %34 = vector.shape_cast %33 : vector<1x1x128xf32> to vector<1x128xf32>
    %cst_26 = arith.constant dense<0.000000e+00> : vector<128xf32>
    %35 = vector.multi_reduction <add>, %22, %cst_26 [0] : vector<128x128xf32> to vector<128xf32>
    %36 = vector.shape_cast %35 : vector<128xf32> to vector<1x128xf32>
    %37 = arith.addf %34, %36 : vector<1x128xf32>
    %c0_27 = arith.constant 0 : index
    %c0_28 = arith.constant 0 : index
    %c0_29 = arith.constant 0 : index
    %38 = vector.load %arg9[%c0_27, %c0_28, %c0_29] : memref<1x1x128xf32, #tpu.memory_space<vmem>>, vector<1x1x128xf32>
    %39 = vector.shape_cast %38 : vector<1x1x128xf32> to vector<1x128xf32>
    %40 = vector.shape_cast %37 : vector<1x128xf32> to vector<1x1x128xf32>
    tpu.vector_store %arg9[%c0_27, %c0_28, %c0_29], %40 {strides = array<i32>} : memref<1x1x128xf32, #tpu.memory_space<vmem>>, vector<1x1x128xf32>,
    %c0_30 = arith.constant 0 : index
    %c0_31 = arith.constant 0 : index
    %c0_32 = arith.constant 0 : index
    %41 = vector.load %arg10[%c0_30, %c0_31, %c0_32] : memref<1x1x1xf32, #tpu.memory_space<vmem>>, vector<1x1x1xf32>
    %42 = vector.shape_cast %41 : vector<1x1x1xf32> to vector<1x1xf32>
    %43 = arith.mulf %21, %21 : vector<128x128xf32>
    %cst_33 = arith.constant dense<0.000000e+00> : vector<128xf32>
    %44 = vector.multi_reduction <add>, %43, %cst_33 [1] : vector<128x128xf32> to vector<128xf32>
    %45 = vector.shape_cast %44 : vector<128xf32> to vector<128x1xf32>
    %cst_34 = arith.constant dense<0.000000e+00> : vector<1xf32>
    %46 = vector.multi_reduction <add>, %45, %cst_34 [0] : vector<128x1xf32> to vector<1xf32>
    %47 = vector.shape_cast %46 : vector<1xf32> to vector<1x1xf32>
    %48 = arith.addf %42, %47 : vector<1x1xf32>
    %c0_35 = arith.constant 0 : index
    %c0_36 = arith.constant 0 : index
    %c0_37 = arith.constant 0 : index
    %49 = vector.load %arg10[%c0_35, %c0_36, %c0_37] : memref<1x1x1xf32, #tpu.memory_space<vmem>>, vector<1x1x1xf32>
    %50 = vector.shape_cast %49 : vector<1x1x1xf32> to vector<1x1xf32>
    %51 = vector.shape_cast %48 : vector<1x1xf32> to vector<1x1x1xf32>
    tpu.vector_store %arg10[%c0_35, %c0_36, %c0_37], %51 {strides = array<i32>} : memref<1x1x1xf32, #tpu.memory_space<vmem>>, vector<1x1x1xf32>,
    %c0_38 = arith.constant 0 : index
    %c0_39 = arith.constant 0 : index
    %c0_40 = arith.constant 0 : index
    %52 = vector.load %arg11[%c0_38, %c0_39, %c0_40] : memref<1x1x1xf32, #tpu.memory_space<vmem>>, vector<1x1x1xf32>
    %53 = vector.shape_cast %52 : vector<1x1x1xf32> to vector<1x1xf32>
    %54 = arith.mulf %22, %22 : vector<128x128xf32>
    %cst_41 = arith.constant dense<0.000000e+00> : vector<128xf32>
    %55 = vector.multi_reduction <add>, %54, %cst_41 [1] : vector<128x128xf32> to vector<128xf32>
    %56 = vector.shape_cast %55 : vector<128xf32> to vector<128x1xf32>
    %cst_42 = arith.constant dense<0.000000e+00> : vector<1xf32>
    %57 = vector.multi_reduction <add>, %56, %cst_42 [0] : vector<128x1xf32> to vector<1xf32>
    %58 = vector.shape_cast %57 : vector<1xf32> to vector<1x1xf32>
    %59 = arith.addf %53, %58 : vector<1x1xf32>
    %c0_43 = arith.constant 0 : index
    %c0_44 = arith.constant 0 : index
    %c0_45 = arith.constant 0 : index
    %60 = vector.load %arg11[%c0_43, %c0_44, %c0_45] : memref<1x1x1xf32, #tpu.memory_space<vmem>>, vector<1x1x1xf32>
    %61 = vector.shape_cast %60 : vector<1x1x1xf32> to vector<1x1xf32>
    %62 = vector.shape_cast %59 : vector<1x1xf32> to vector<1x1x1xf32>
    tpu.vector_store %arg11[%c0_43, %c0_44, %c0_45], %62 {strides = array<i32>} : memref<1x1x1xf32, #tpu.memory_space<vmem>>, vector<1x1x1xf32>,
    return
  }
  func.func @transform_0(%arg0: i32, %arg1: i32) -> (i32, i32, i32) {
    %c0_i32 = arith.constant 0 : i32
    %c0_i32_0 = arith.constant 0 : i32
    return %arg0, %arg1, %c0_i32 : i32, i32, i32
  }
  func.func @transform_1(%arg0: i32, %arg1: i32) -> (i32, i32) {
    %c0_i32 = arith.constant 0 : i32
    %c0_i32_0 = arith.constant 0 : i32
    %c0_i32_1 = arith.constant 0 : i32
    return %c0_i32, %c0_i32_0 : i32, i32
  }
  func.func @transform_2(%arg0: i32, %arg1: i32) -> (i32, i32) {
    %c0_i32 = arith.constant 0 : i32
    %c0_i32_0 = arith.constant 0 : i32
    %c0_i32_1 = arith.constant 0 : i32
    return %c0_i32, %c0_i32_0 : i32, i32
  }
  func.func @transform_3(%arg0: i32, %arg1: i32) -> (i32, i32) {
    %c0_i32 = arith.constant 0 : i32
    %c0_i32_0 = arith.constant 0 : i32
    %c0_i32_1 = arith.constant 0 : i32
    return %c0_i32, %c0_i32_0 : i32, i32
  }
  func.func @transform_4(%arg0: i32, %arg1: i32) -> (i32, i32) {
    %c0_i32 = arith.constant 0 : i32
    %c0_i32_0 = arith.constant 0 : i32
    %c0_i32_1 = arith.constant 0 : i32
    return %c0_i32, %c0_i32_0 : i32, i32
  }
  func.func @transform_5(%arg0: i32, %arg1: i32) -> (i32, i32, i32) {
    %c0_i32 = arith.constant 0 : i32
    %c0_i32_0 = arith.constant 0 : i32
    return %arg0, %arg1, %c0_i32 : i32, i32, i32
  }
  func.func @transform_6(%arg0: i32, %arg1: i32) -> (i32, i32, i32) {
    %c0_i32 = arith.constant 0 : i32
    %c0_i32_0 = arith.constant 0 : i32
    %c0_i32_1 = arith.constant 0 : i32
    return %arg0, %c0_i32, %c0_i32_0 : i32, i32, i32
  }
  func.func @transform_7(%arg0: i32, %arg1: i32) -> (i32, i32, i32) {
    %c0_i32 = arith.constant 0 : i32
    %c0_i32_0 = arith.constant 0 : i32
    %c0_i32_1 = arith.constant 0 : i32
    return %arg0, %c0_i32, %c0_i32_0 : i32, i32, i32
  }
  func.func @transform_8(%arg0: i32, %arg1: i32) -> (i32, i32, i32) {
    %c0_i32 = arith.constant 0 : i32
    %c0_i32_0 = arith.constant 0 : i32
    %c0_i32_1 = arith.constant 0 : i32
    return %arg0, %c0_i32, %c0_i32_0 : i32, i32, i32
  }
  func.func @transform_9(%arg0: i32, %arg1: i32) -> (i32, i32, i32) {
    %c0_i32 = arith.constant 0 : i32
    %c0_i32_0 = arith.constant 0 : i32
    %c0_i32_1 = arith.constant 0 : i32
    return %arg0, %c0_i32, %c0_i32_0 : i32, i32, i32
  }
}

</mosaic_0001>

<llo_original>
// kernel: tpu_custom_call.1
$region0: #{tpu_custom_call.1}
  #allocation0 [shape = 'u32[]', space=smem, size = 0x4, offset = 0x4, fixed_abs, tag = 'smem constant byte address 0x4 - core index']
  #allocation1 [shape = 'u32[144,128]{1,0:T(1,128)}', space=vmem, size = 0x12000, scoped, tag = 'internal scratch']
  %s0 = inlined_call_operand.vmem [shape: bf16[2,256,8], index: 0, kind: input, shape index: {}]
  %s1 = inlined_call_operand.vmem [shape: bf16[8,128], index: 1, kind: input, shape index: {}]
  %s2 = inlined_call_operand.vmem [shape: f32[1,128], index: 2, kind: input, shape index: {}]
  %s3 = inlined_call_operand.vmem [shape: bf16[128,384], index: 3, kind: input, shape index: {}]
  %s4 = inlined_call_operand.vmem [shape: f32[1,384], index: 4, kind: input, shape index: {}]
  %s5 = inlined_call_operand.hbm [shape: bf16[2,256,128], index: 5, kind: output, shape index: {0}]
  %s6 = inlined_call_operand.hbm [shape: f32[2,128,128], index: 6, kind: output, shape index: {1}]
  %s7 = inlined_call_operand.hbm [shape: f32[2,1,128], index: 7, kind: output, shape index: {2}]
  %s8 = inlined_call_operand.vmem [shape: f32[2,1,1], index: 8, kind: output, shape index: {3}]
  %s9 = inlined_call_operand.vmem [shape: f32[2,1,1], index: 9, kind: output, shape index: {4}]
  %10 = xla_tuple %s5, %s6, %s7, %s8, %s9
  %s11 = sld [smem:[#allocation0]]
  $region89: #{tpu_custom_call.1} parent=0
    _
  %s13 = ssub.s32 1, %s11
  %s14 = scalar_select 0, %s13, %s11
  $region1: #{tpu_custom_call.1} parent=0
    #allocation2 [shape = 'u8[65536]{0}', space=vmem, size = 0x10000, scoped, tag = 'output window, operand 0']
    #allocation3 [shape = 's32[2]{0}', space=sflag, size = 0x8, scoped, tag = 'scoped memory for tpu_custom_call.1']
    #allocation4 [shape = 'u8[131072]{0}', space=vmem, size = 0x20000, scoped, tag = 'output window, operand 1']
    #allocation5 [shape = 's32[2]{0}', space=sflag, size = 0x8, scoped, tag = 'scoped memory for tpu_custom_call.1']
    #allocation6 [shape = 'u8[1024]{0}', space=vmem, size = 0x400, scoped, tag = 'output window, operand 2']
    %15 = vsyncpa [#allocation3], 0
    %s16 = scalar_lea.sflag [#allocation3], 1
    %17 = vsyncpa %s16, 0
    %18 = vsyncpa [#allocation5], 0
    %s19 = scalar_lea.sflag [#allocation5], 1
    %20 = vsyncpa %s19, 0
    loop: start=0, step=1, limit=6
    $region2: #{tpu_custom_call.1} parent=1 // loop_pre_header
      _
    $region3: #{tpu_custom_call.1} parent=1 // loop_header
      %s22 = sphi 0, %s26
      %p23 = scmp.ge.s32.totalorder %s22, 6
      %s29 = sphi 0, %s41
      %s30 = sphi 0, %s37
      %s31 = sphi 0, %s29
      %s32 = sphi 0, %s30
      %s33 = sphi 0, %s31
      %s34 = sphi 0, %s32
      %s46 = sphi 0, %s48
      %s49 = sphi 0, %s46
      %s50 = sphi 0, %s49
      %s66 = sphi 0, %s50
      %s70 = sphi 0, %s70
      %s72 = sphi 0, %s70
      %s73 = sphi 0, %s72
      %s87 = sphi 0, %s73
      %s91 = sphi 0, %s91
      %s93 = sphi 0, %s91
      %s94 = sphi 0, %s93
      %s108 = sphi 0, %s94
      %s112 = sphi 0, %s112
      %s114 = sphi 0, %s112
      %s115 = sphi 0, %s114
      %s129 = sphi 0, %s115
      %s133 = sphi 0, %s133
      %s135 = sphi 0, %s133
      %s136 = sphi 0, %s135
      %s150 = sphi 0, %s136
      %s158 = sphi 0, %s160
      %s161 = sphi 0, %s158
      %s162 = sphi 0, %s161
      %s178 = sphi 0, %s162
      %s184 = sphi 0, %s186
      %s187 = sphi 0, %s184
      %s188 = sphi 0, %s187
      %s204 = sphi 0, %s188
      %s210 = sphi 0, %s212
      %s213 = sphi 0, %s210
      %s214 = sphi 0, %s213
      %s230 = sphi 0, %s214
      %s236 = sphi 0, %s238
      %s239 = sphi 0, %s236
      %s240 = sphi 0, %s239
      %s256 = sphi 0, %s240
      %s262 = sphi 0, %s264
      %s265 = sphi 0, %s262
      %s266 = sphi 0, %s265
      %s282 = sphi 0, %s266
    $region4: #{tpu_custom_call.1} parent=1 // loop_header_branch
      %25 = sbr.rel (%p23) target = $region8
    $region5: #{tpu_custom_call.1} parent=1 // loop_body
      %s27 = ssub.s32 %s22, 1
      %s28 = ssub.s32 %s22, 2
      %s35 = sadd.s32 1, %s30
      %p36 = scmp.ge.s32.totalorder %s35, 2
      %s37 = scalar_select %p36, 0, %s35
      %s38 = sadd.s32 1, %s29
      %s39 = scalar_select %p36, %s38, %s29
      %p40 = scmp.ge.s32.totalorder %s39, 2
      %s41 = scalar_select %p40, 0, %s39
      %s42 = ssub.s32 %s29, %s41
      %s43 = ssub.s32 %s30, %s37
      %s44 = sor.u32 %s42, %s43
      %p45 = scmp.eq.s32.totalorder %s44, 0
      %s47 = sadd.s32 %s46, 1
      %s48 = scalar_select %p45, %s46, %s47
      %p51 = pneg %p45
      %p52 = scmp.eq.s32.totalorder %s22, 3
      %p53 = por %p51, %p52
      %p54 = scmp.ne.s32.totalorder %s46, %s49
      %p55 = scmp.eq.s32.totalorder %s22, 0
      %p56 = por %p54, %p55
      %p57 = scmp.ne.s32.totalorder %s46, %s49
      %p58 = scmp.eq.s32.totalorder %s27, 3
      %p59 = por %p57, %p58
      %p60 = scmp.ne.s32.totalorder %s49, %s50
      %p61 = scmp.eq.s32.totalorder %s27, 0
      %p62 = por %p60, %p61
      %p63 = scmp.ne.s32.totalorder %s49, %s50
      %p64 = scmp.eq.s32.totalorder %s28, 3
      %p65 = por %p63, %p64
      %p67 = scmp.ne.s32.totalorder %s50, %s66
      %p68 = scmp.eq.s32.totalorder %s28, 0
      %p69 = por %p67, %p68
      %s71 = sadd.s32 %s70, 1
      %p74 = scmp.eq.s32.totalorder %s22, 3
      %p75 = scmp.ne.s32.totalorder %s70, %s72
      %p76 = scmp.eq.s32.totalorder %s22, 0
      %p77 = por %p75, %p76
      %p78 = scmp.ne.s32.totalorder %s70, %s72
      %p79 = scmp.eq.s32.totalorder %s27, 3
      %p80 = por %p78, %p79
      %p81 = scmp.ne.s32.totalorder %s72, %s73
      %p82 = scmp.eq.s32.totalorder %s27, 0
      %p83 = por %p81, %p82
      %p84 = scmp.ne.s32.totalorder %s72, %s73
      %p85 = scmp.eq.s32.totalorder %s28, 3
      %p86 = por %p84, %p85
      %p88 = scmp.ne.s32.totalorder %s73, %s87
      %p89 = scmp.eq.s32.totalorder %s28, 0
      %p90 = por %p88, %p89
      %s92 = sadd.s32 %s91, 1
      %p95 = scmp.eq.s32.totalorder %s22, 3
      %p96 = scmp.ne.s32.totalorder %s91, %s93
      %p97 = scmp.eq.s32.totalorder %s22, 0
      %p98 = por %p96, %p97
      %p99 = scmp.ne.s32.totalorder %s91, %s93
      %p100 = scmp.eq.s32.totalorder %s27, 3
      %p101 = por %p99, %p100
      %p102 = scmp.ne.s32.totalorder %s93, %s94
      %p103 = scmp.eq.s32.totalorder %s27, 0
      %p104 = por %p102, %p103
      %p105 = scmp.ne.s32.totalorder %s93, %s94
      %p106 = scmp.eq.s32.totalorder %s28, 3
      %p107 = por %p105, %p106
      %p109 = scmp.ne.s32.totalorder %s94, %s108
      %p110 = scmp.eq.s32.totalorder %s28, 0
      %p111 = por %p109, %p110
      %s113 = sadd.s32 %s112, 1
      %p116 = scmp.eq.s32.totalorder %s22, 3
      %p117 = scmp.ne.s32.totalorder %s112, %s114
      %p118 = scmp.eq.s32.totalorder %s22, 0
      %p119 = por %p117, %p118
      %p120 = scmp.ne.s32.totalorder %s112, %s114
      %p121 = scmp.eq.s32.totalorder %s27, 3
      %p122 = por %p120, %p121
      %p123 = scmp.ne.s32.totalorder %s114, %s115
      %p124 = scmp.eq.s32.totalorder %s27, 0
      %p125 = por %p123, %p124
      %p126 = scmp.ne.s32.totalorder %s114, %s115
      %p127 = scmp.eq.s32.totalorder %s28, 3
      %p128 = por %p126, %p127
      %p130 = scmp.ne.s32.totalorder %s115, %s129
      %p131 = scmp.eq.s32.totalorder %s28, 0
      %p132 = por %p130, %p131
      %s134 = sadd.s32 %s133, 1
      %p137 = scmp.eq.s32.totalorder %s22, 3
      %p138 = scmp.ne.s32.totalorder %s133, %s135
      %p139 = scmp.eq.s32.totalorder %s22, 0
      %p140 = por %p138, %p139
      %p141 = scmp.ne.s32.totalorder %s133, %s135
      %p142 = scmp.eq.s32.totalorder %s27, 3
      %p143 = por %p141, %p142
      %p144 = scmp.ne.s32.totalorder %s135, %s136
      %p145 = scmp.eq.s32.totalorder %s27, 0
      %p146 = por %p144, %p145
      %p147 = scmp.ne.s32.totalorder %s135, %s136
      %p148 = scmp.eq.s32.totalorder %s28, 3
      %p149 = por %p147, %p148
      %p151 = scmp.ne.s32.totalorder %s136, %s150
      %p152 = scmp.eq.s32.totalorder %s28, 0
      %p153 = por %p151, %p152
      %s154 = ssub.s32 %s29, %s41
      %s155 = ssub.s32 %s30, %s37
      %s156 = sor.u32 %s154, %s155
      %p157 = scmp.eq.s32.totalorder %s156, 0
      %s159 = sadd.s32 %s158, 1
      %s160 = scalar_select %p157, %s158, %s159
      %p163 = pneg %p157
      %p164 = scmp.eq.s32.totalorder %s22, 3
      %p165 = por %p163, %p164
      %p166 = scmp.ne.s32.totalorder %s158, %s161
      %p167 = scmp.eq.s32.totalorder %s22, 0
      %p168 = por %p166, %p167
      %p169 = scmp.ne.s32.totalorder %s158, %s161
      %p170 = scmp.eq.s32.totalorder %s27, 3
      %p171 = por %p169, %p170
      %p172 = scmp.ne.s32.totalorder %s161, %s162
      %p173 = scmp.eq.s32.totalorder %s27, 0
      %p174 = por %p172, %p173
      %p175 = scmp.ne.s32.totalorder %s161, %s162
      %p176 = scmp.eq.s32.totalorder %s28, 3
      %p177 = por %p175, %p176
      %p179 = scmp.ne.s32.totalorder %s162, %s178
      %p180 = scmp.eq.s32.totalorder %s28, 0
      %p181 = por %p179, %p180
      %s182 = ssub.s32 %s29, %s41
      %p183 = scmp.eq.s32.totalorder %s182, 0
      %s185 = sadd.s32 %s184, 1
      %s186 = scalar_select %p183, %s184, %s185
      %p189 = pneg %p183
      %p190 = scmp.eq.s32.totalorder %s22, 3
      %p191 = por %p189, %p190
      %p192 = scmp.ne.s32.totalorder %s184, %s187
      %p193 = scmp.eq.s32.totalorder %s22, 0
      %p194 = por %p192, %p193
      %p195 = scmp.ne.s32.totalorder %s184, %s187
      %p196 = scmp.eq.s32.totalorder %s27, 3
      %p197 = por %p195, %p196
      %p198 = scmp.ne.s32.totalorder %s187, %s188
      %p199 = scmp.eq.s32.totalorder %s27, 0
      %p200 = por %p198, %p199
      %p201 = scmp.ne.s32.totalorder %s187, %s188
      %p202 = scmp.eq.s32.totalorder %s28, 3
      %p203 = por %p201, %p202
      %p205 = scmp.ne.s32.totalorder %s188, %s204
      %p206 = scmp.eq.s32.totalorder %s28, 0
      %p207 = por %p205, %p206
      %s208 = ssub.s32 %s29, %s41
      %p209 = scmp.eq.s32.totalorder %s208, 0
      %s211 = sadd.s32 %s210, 1
      %s212 = scalar_select %p209, %s210, %s211
      %p215 = pneg %p209
      %p216 = scmp.eq.s32.totalorder %s22, 3
      %p217 = por %p215, %p216
      %p218 = scmp.ne.s32.totalorder %s210, %s213
      %p219 = scmp.eq.s32.totalorder %s22, 0
      %p220 = por %p218, %p219
      %p221 = scmp.ne.s32.totalorder %s210, %s213
      %p222 = scmp.eq.s32.totalorder %s27, 3
      %p223 = por %p221, %p222
      %p224 = scmp.ne.s32.totalorder %s213, %s214
      %p225 = scmp.eq.s32.totalorder %s27, 0
      %p226 = por %p224, %p225
      %p227 = scmp.ne.s32.totalorder %s213, %s214
      %p228 = scmp.eq.s32.totalorder %s28, 3
      %p229 = por %p227, %p228
      %p231 = scmp.ne.s32.totalorder %s214, %s230
      %p232 = scmp.eq.s32.totalorder %s28, 0
      %p233 = por %p231, %p232
      %s234 = ssub.s32 %s29, %s41
      %p235 = scmp.eq.s32.totalorder %s234, 0
      %s237 = sadd.s32 %s236, 1
      %s238 = scalar_select %p235, %s236, %s237
      %p241 = pneg %p235
      %p242 = scmp.eq.s32.totalorder %s22, 3
      %p243 = por %p241, %p242
      %p244 = scmp.ne.s32.totalorder %s236, %s239
      %p245 = scmp.eq.s32.totalorder %s22, 0
      %p246 = por %p244, %p245
      %p247 = scmp.ne.s32.totalorder %s236, %s239
      %p248 = scmp.eq.s32.totalorder %s27, 3
      %p249 = por %p247, %p248
      %p250 = scmp.ne.s32.totalorder %s239, %s240
      %p251 = scmp.eq.s32.totalorder %s27, 0
      %p252 = por %p250, %p251
      %p253 = scmp.ne.s32.totalorder %s239, %s240
      %p254 = scmp.eq.s32.totalorder %s28, 3
      %p255 = por %p253, %p254
      %p257 = scmp.ne.s32.totalorder %s240, %s256
      %p258 = scmp.eq.s32.totalorder %s28, 0
      %p259 = por %p257, %p258
      %s260 = ssub.s32 %s29, %s41
      %p261 = scmp.eq.s32.totalorder %s260, 0
      %s263 = sadd.s32 %s262, 1
      %s264 = scalar_select %p261, %s262, %s263
      %p267 = pneg %p261
      %p268 = scmp.eq.s32.totalorder %s22, 3
      %p269 = por %p267, %p268
      %p270 = scmp.ne.s32.totalorder %s262, %s265
      %p271 = scmp.eq.s32.totalorder %s22, 0
      %p272 = por %p270, %p271
      %p273 = scmp.ne.s32.totalorder %s262, %s265
      %p274 = scmp.eq.s32.totalorder %s27, 3
      %p275 = por %p273, %p274
      %p276 = scmp.ne.s32.totalorder %s265, %s266
      %p277 = scmp.eq.s32.totalorder %s27, 0
      %p278 = por %p276, %p277
      %p279 = scmp.ne.s32.totalorder %s265, %s266
      %p280 = scmp.eq.s32.totalorder %s28, 3
      %p281 = por %p279, %p280
      %p283 = scmp.ne.s32.totalorder %s266, %s282
      %p284 = scmp.eq.s32.totalorder %s28, 0
      %p285 = por %p283, %p284
      %p286 = scmp.le.s32.totalorder 1, %s22
      %p287 = scmp.lt.s32.totalorder %s22, 5
      %p288 = pnand %p286, %p287
      %p289 = pneg %p288
      // Predicated region
      $region9: #{tpu_custom_call.1} parent=5 // pred_check
        _
      $region10: #{tpu_custom_call.1} parent=5 // pred_check_branch
        %291 = sbr.rel (%p288) target = $region12
      $region11: #{tpu_custom_call.1} parent=5 // pred_region
        %s292 = ssub.s32 %s22, 1
        // Predicated region
        $region13: #{tpu_custom_call.1} parent=11 // pred_check
          %p293 = pneg %p83
        $region14: #{tpu_custom_call.1} parent=11 // pred_check_branch
          %295 = sbr.rel (%p293) target = $region16
        $region15: #{tpu_custom_call.1} parent=11 // pred_region
          _
        $region16: #{tpu_custom_call.1} parent=11 // pred_fallthru
          _
        // Predicated region
        $region17: #{tpu_custom_call.1} parent=11 // pred_check
          %p296 = pneg %p104
        $region18: #{tpu_custom_call.1} parent=11 // pred_check_branch
          %298 = sbr.rel (%p296) target = $region20
        $region19: #{tpu_custom_call.1} parent=11 // pred_region
          _
        $region20: #{tpu_custom_call.1} parent=11 // pred_fallthru
          _
        // Predicated region
        $region21: #{tpu_custom_call.1} parent=11 // pred_check
          %p299 = pneg %p125
        $region22: #{tpu_custom_call.1} parent=11 // pred_check_branch
          %301 = sbr.rel (%p299) target = $region24
        $region23: #{tpu_custom_call.1} parent=11 // pred_region
          _
        $region24: #{tpu_custom_call.1} parent=11 // pred_fallthru
          _
        // Predicated region
        $region25: #{tpu_custom_call.1} parent=11 // pred_check
          %p302 = pneg %p146
        $region26: #{tpu_custom_call.1} parent=11 // pred_check_branch
          %304 = sbr.rel (%p302) target = $region28
        $region27: #{tpu_custom_call.1} parent=11 // pred_region
          _
        $region28: #{tpu_custom_call.1} parent=11 // pred_fallthru
          _
      $region12: #{tpu_custom_call.1} parent=5 // pred_fallthru
        _
      %p305 = scmp.lt.s32.totalorder %s22, 4
      // Predicated region
      $region29: #{tpu_custom_call.1} parent=5 // pred_check
        %p306 = pneg %p305
      $region30: #{tpu_custom_call.1} parent=5 // pred_check_branch
        %308 = sbr.rel (%p306) target = $region32
      $region31: #{tpu_custom_call.1} parent=5 // pred_region
        // Predicated region
        $region33: #{tpu_custom_call.1} parent=31 // pred_check
          %p309 = pneg %p56
        $region34: #{tpu_custom_call.1} parent=31 // pred_check_branch
          %311 = sbr.rel (%p309) target = $region36
        $region35: #{tpu_custom_call.1} parent=31 // pred_region
          %s312 = smul.u32 16, %s30
          %p313 = scmp.lt.s32.totalorder %s29, 1
          %s314 = scalar_select %p313, %s29, 1
          %p315 = scmp.lt.s32.totalorder %s312, 31
          %s316 = scalar_select %p315, %s312, 31
          %s317 = smul.addr %s314, 32
          %s318 = sadd.s32 %s316, %s317
          %s319 = smul.addr %s318, 4
          %s320 = scalar_lea.vmem %s0, %s319
          %s321 = smul.u32 16, %s30
        $region36: #{tpu_custom_call.1} parent=31 // pred_fallthru
          _
      $region32: #{tpu_custom_call.1} parent=5 // pred_fallthru
        _
      %p322 = scmp.le.s32.totalorder 1, %s22
      %p323 = scmp.lt.s32.totalorder %s22, 5
      %p324 = pnand %p322, %p323
      %p325 = pneg %p324
      // Predicated region
      $region37: #{tpu_custom_call.1} parent=5 // pred_check
        _
      $region38: #{tpu_custom_call.1} parent=5 // pred_check_branch
        %327 = sbr.rel (%p324) target = $region40
      $region39: #{tpu_custom_call.1} parent=5 // pred_region
        %s328 = ssub.s32 %s22, 1
        %s329 = smul.u32 16, %s32
        %p330 = scmp.lt.s32.totalorder %s31, 1
        %s331 = scalar_select %p330, %s31, 1
        %p332 = scmp.lt.s32.totalorder %s329, 31
        %s333 = scalar_select %p332, %s329, 31
        %s334 = smul.addr %s331, 32
        %s335 = sadd.s32 %s333, %s334
        %s336 = smul.addr %s335, 4
        %s337 = scalar_lea.vmem %s0, %s336
        %p338 = pneg %p62
        %p339 = pneg %p59
        %p340 = pneg %p83
        %p341 = pneg %p80
        %p342 = pneg %p104
        %p343 = pneg %p101
        %p344 = pneg %p125
        %p345 = pneg %p122
        %p346 = pneg %p146
        %p347 = pneg %p143
        %p348 = pneg %p174
        %p349 = pneg %p171
        %s350 = sand.u32 %s161, 1
        %s351 = scalar_lea.sflag [#allocation3], %s350
        %s352 = sand.u32 %s161, 1
        %s353 = smul.addr %s352, 64
        %s354 = scalar_lea.vmem [#allocation2], %s353
        %p355 = pneg %p200
        %p356 = pneg %p197
        %s357 = sand.u32 %s27, 1
        %s358 = scalar_lea.sflag [#allocation5], %s357
        %s359 = sand.u32 %s187, 1
        %s360 = smul.addr %s359, 128
        %s361 = scalar_lea.vmem [#allocation4], %s360
        %p362 = pneg %p226
        %p363 = pneg %p223
        %s364 = sand.u32 %s27, 1
        %s365 = scalar_lea.sflag [#allocation5], %s364
        %s366 = sand.u32 %s213, 1
        %s367 = scalar_lea.vmem [#allocation6], %s366
        %p368 = pneg %p252
        %p369 = pneg %p249
        %p370 = scmp.lt.s32.totalorder %s31, 1
        %s371 = scalar_select %p370, %s31, 1
        %s372 = scalar_lea.vmem %s8, %s371
        %p373 = pneg %p278
        %p374 = pneg %p275
        %p375 = scmp.lt.s32.totalorder %s31, 1
        %s376 = scalar_select %p375, %s31, 1
        %s377 = scalar_lea.vmem %s9, %s376
        %s378 = smul.u32 16, %s32
        %p379 = scmp.lt.s32.totalorder %s31, 1
        %s380 = scalar_select %p379, %s31, 1
        %p381 = scmp.lt.s32.totalorder %s378, 31
        %s382 = scalar_select %p381, %s378, 31
        %s383 = smul.addr %s380, 32
        %s384 = sadd.s32 %s382, %s383
        %s385 = smul.addr %s384, 4
        %s386 = scalar_lea.vmem %s0, %s385
        %s387 = smul.u32 16, %s32
        %s388 = smul.u32 16, %s32
        %p389 = scmp.lt.s32.totalorder %s31, 1
        %s390 = scalar_select %p389, %s31, 1
        %s391 = scalar_lea.vmem %s8, %s390
        %p392 = scmp.lt.s32.totalorder %s31, 1
        %s393 = scalar_select %p392, %s31, 1
        %s394 = scalar_lea.vmem %s9, %s393
        %p396 = scmp.eq.s32.totalorder %s32, 0
        // Predicated region
        $region41: #{tpu_custom_call.1} parent=39 // pred_check
          %p397 = pneg %p396
        $region42: #{tpu_custom_call.1} parent=39 // pred_check_branch
          %399 = sbr.rel (%p397) target = $region44
        $region43: #{tpu_custom_call.1} parent=39 // pred_region
          %400 = vst [vmem:[%s361] sm:$0xff] 0.0
          %401 = vst [vmem:[%s361 + $0x8] sm:$0xff] 0.0
          %402 = vst [vmem:[%s361 + $0x10] sm:$0xff] 0.0
          %403 = vst [vmem:[%s361 + $0x18] sm:$0xff] 0.0
          %404 = vst [vmem:[%s361 + $0x20] sm:$0xff] 0.0
          %405 = vst [vmem:[%s361 + $0x28] sm:$0xff] 0.0
          %406 = vst [vmem:[%s361 + $0x30] sm:$0xff] 0.0
          %407 = vst [vmem:[%s361 + $0x38] sm:$0xff] 0.0
          %408 = vst [vmem:[%s361 + $0x40] sm:$0xff] 0.0
          %409 = vst [vmem:[%s361 + $0x48] sm:$0xff] 0.0
          %410 = vst [vmem:[%s361 + $0x50] sm:$0xff] 0.0
          %411 = vst [vmem:[%s361 + $0x58] sm:$0xff] 0.0
          %412 = vst [vmem:[%s361 + $0x60] sm:$0xff] 0.0
          %413 = vst [vmem:[%s361 + $0x68] sm:$0xff] 0.0
          %414 = vst [vmem:[%s361 + $0x70] sm:$0xff] 0.0
          %415 = vst [vmem:[%s361 + $0x78] sm:$0xff] 0.0
          %416 = vst [vmem:[%s367] sm:$0x1] 0.0
          %vm417 = vcmask 0
          %418 = vst.msk [vmem:[%s391] sm:$0x1] %vm417, 0.0
          %419 = vst.msk [vmem:[%s394] sm:$0x1] %vm417, 0.0
        $region44: #{tpu_custom_call.1} parent=39 // pred_fallthru
          _
        %v420 = vld [vmem:[%s386] sm:$0xf]
        %v421 = vld [vmem:[%s386 + $0x4] sm:$0xf]
        %v422 = vld [vmem:[%s386 + $0x8] sm:$0xf]
        %v423 = vld [vmem:[%s386 + $0xc] sm:$0xf]
        %v424 = vld [vmem:[%s386 + $0x10] sm:$0xf]
        %v425 = vld [vmem:[%s386 + $0x14] sm:$0xf]
        %v426 = vld [vmem:[%s386 + $0x18] sm:$0xf]
        %v427 = vld [vmem:[%s386 + $0x1c] sm:$0xf]
        %v428 = vld [vmem:[%s386 + $0x20] sm:$0xf]
        %v429 = vld [vmem:[%s386 + $0x24] sm:$0xf]
        %v430 = vld [vmem:[%s386 + $0x28] sm:$0xf]
        %v431 = vld [vmem:[%s386 + $0x2c] sm:$0xf]
        %v432 = vld [vmem:[%s386 + $0x30] sm:$0xf]
        %v433 = vld [vmem:[%s386 + $0x34] sm:$0xf]
        %v434 = vld [vmem:[%s386 + $0x38] sm:$0xf]
        %v435 = vld [vmem:[%s386 + $0x3c] sm:$0xf]
        %v436 = vld [vmem:[%s1] sm:$0xf]
        %v437 = vld [vmem:[%s2] sm:$0x1]
        %v439 = vlaneseq
        %v440 = vshrl.u32 %v439, 7
        %v441 = vsub.s32 0, %v440
        %v442 = vrot.slane %v437, %v441
        %v460 = vunpack.c.l.b16 %v420
        %v461 = vunpack.c.l.b16 %v421
        %v462 = vunpack.c.l.b16 %v422
        %v463 = vunpack.c.l.b16 %v423
        %v464 = vunpack.c.l.b16 %v424
        %v465 = vunpack.c.l.b16 %v425
        %v466 = vunpack.c.l.b16 %v426
        %v467 = vunpack.c.l.b16 %v427
        %v468 = vunpack.c.l.b16 %v428
        %v469 = vunpack.c.l.b16 %v429
        %v470 = vunpack.c.l.b16 %v430
        %v471 = vunpack.c.l.b16 %v431
        %v472 = vunpack.c.l.b16 %v432
        %v473 = vunpack.c.l.b16 %v433
        %v474 = vunpack.c.l.b16 %v434
        %v475 = vunpack.c.l.b16 %v435
        %v476 = vpack.c.b16 %v461, %v460
        %v477 = vpack.c.b16 %v463, %v462
        %v478 = vpack.c.b16 %v465, %v464
        %v479 = vpack.c.b16 %v467, %v466
        %v480 = vpack.c.b16 %v469, %v468
        %v481 = vpack.c.b16 %v471, %v470
        %v482 = vpack.c.b16 %v473, %v472
        %v483 = vpack.c.b16 %v475, %v474
        %vm484 = vcmask 64512
        %v486 = vsel %vm484, %v476, 0
        %v489 = vsel %vm484, %v477, 0
        %v492 = vsel %vm484, %v478, 0
        %v495 = vsel %vm484, %v479, 0
        %v498 = vsel %vm484, %v480, 0
        %v501 = vsel %vm484, %v481, 0
        %v504 = vsel %vm484, %v482, 0
        %v507 = vsel %vm484, %v483, 0
        %vm509 = vcmask 1043456
        %v511 = vsel %vm509, %v436, 0
        %513 = vmatprep.subr.bf16.mxu0 0
        %514 = vmatpush1.bf16.msra.mxu0 %v511
        %515 = vmatprep.subr.bf16.mxu0 0
        %516 = vmatpush1.bf16.msra.mxu0 0
        %517 = vmatprep.subr.bf16.mxu0 0
        %518 = vmatpush1.bf16.msra.mxu0 0
        %519 = vmatprep.subr.bf16.mxu0 0
        %520 = vmatpush1.bf16.msra.mxu0 0
        %521 = vmatprep.subr.bf16.mxu0 0
        %522 = vmatpush1.bf16.msra.mxu0 0
        %523 = vmatprep.subr.bf16.mxu0 0
        %524 = vmatpush1.bf16.msra.mxu0 0
        %525 = vmatprep.subr.bf16.mxu0 0
        %526 = vmatpush1.bf16.msra.mxu0 0
        %527 = vmatprep.subr.bf16.mxu0 0
        %528 = vmatpush1.bf16.msra.mxu0 0
        %529 = vmatprep.subr.bf16.mxu0 0
        %530 = vmatpush1.bf16.msra.mxu0 0
        %531 = vmatprep.subr.bf16.mxu0 0
        %532 = vmatpush1.bf16.msra.mxu0 0
        %533 = vmatprep.subr.bf16.mxu0 0
        %534 = vmatpush1.bf16.msra.mxu0 0
        %535 = vmatprep.subr.bf16.mxu0 0
        %536 = vmatpush1.bf16.msra.mxu0 0
        %537 = vmatprep.subr.bf16.mxu0 0
        %538 = vmatpush1.bf16.msra.mxu0 0
        %539 = vmatprep.subr.bf16.mxu0 0
        %540 = vmatpush1.bf16.msra.mxu0 0
        %541 = vmatprep.subr.bf16.mxu0 0
        %542 = vmatpush1.bf16.msra.mxu0 0
        %543 = vmatprep.subr.bf16.mxu0 0
        %544 = vmatpush1.bf16.msra.mxu0 0
        %545 = vmatprep.mubr.bf16.mxu0 0
        %546 = vmatmul.mubr.bf16.gmra.mrb[0].mxu0 %v486
        %v547 = vpop.f32.mrb[0].mxu0
        %v548 = vadd.f32 %v442, %v547
        %v549 = vpop.f32.mrb[0].mxu0
        %v550 = vpop.f32.mrb[0].mxu0
        %v551 = vadd.f32 %v442, %v550
        %v552 = vpop.f32.mrb[0].mxu0
        %553 = vmatprep.mubr.bf16.mxu0 0
        %554 = vmatmul.mubr.bf16.gmra.mrb[0].mxu0 %v489
        %v555 = vpop.f32.mrb[0].mxu0
        %v556 = vadd.f32 %v442, %v555
        %v557 = vpop.f32.mrb[0].mxu0
        %v558 = vpop.f32.mrb[0].mxu0
        %v559 = vadd.f32 %v442, %v558
        %v560 = vpop.f32.mrb[0].mxu0
        %561 = vmatprep.mubr.bf16.mxu0 0
        %562 = vmatmul.mubr.bf16.gmra.mrb[0].mxu0 %v492
        %v563 = vpop.f32.mrb[0].mxu0
        %v564 = vadd.f32 %v442, %v563
        %v565 = vpop.f32.mrb[0].mxu0
        %v566 = vpop.f32.mrb[0].mxu0
        %v567 = vadd.f32 %v442, %v566
        %v568 = vpop.f32.mrb[0].mxu0
        %569 = vmatprep.mubr.bf16.mxu0 0
        %570 = vmatmul.mubr.bf16.gmra.mrb[0].mxu0 %v495
        %v571 = vpop.f32.mrb[0].mxu0
        %v572 = vadd.f32 %v442, %v571
        %v573 = vpop.f32.mrb[0].mxu0
        %v574 = vpop.f32.mrb[0].mxu0
        %v575 = vadd.f32 %v442, %v574
        %v576 = vpop.f32.mrb[0].mxu0
        %577 = vmatprep.mubr.bf16.mxu0 0
        %578 = vmatmul.mubr.bf16.gmra.mrb[0].mxu0 %v498
        %v579 = vpop.f32.mrb[0].mxu0
        %v580 = vadd.f32 %v442, %v579
        %v581 = vpop.f32.mrb[0].mxu0
        %v582 = vpop.f32.mrb[0].mxu0
        %v583 = vadd.f32 %v442, %v582
        %v584 = vpop.f32.mrb[0].mxu0
        %585 = vmatprep.mubr.bf16.mxu0 0
        %586 = vmatmul.mubr.bf16.gmra.mrb[0].mxu0 %v501
        %v587 = vpop.f32.mrb[0].mxu0
        %v588 = vadd.f32 %v442, %v587
        %v589 = vpop.f32.mrb[0].mxu0
        %v590 = vpop.f32.mrb[0].mxu0
        %v591 = vadd.f32 %v442, %v590
        %v592 = vpop.f32.mrb[0].mxu0
        %593 = vmatprep.mubr.bf16.mxu0 0
        %594 = vmatmul.mubr.bf16.gmra.mrb[0].mxu0 %v504
        %v595 = vpop.f32.mrb[0].mxu0
        %v596 = vadd.f32 %v442, %v595
        %v597 = vpop.f32.mrb[0].mxu0
        %v598 = vpop.f32.mrb[0].mxu0
        %v599 = vadd.f32 %v442, %v598
        %v600 = vpop.f32.mrb[0].mxu0
        %601 = vmatprep.mubr.bf16.mxu0 0
        %602 = vmatmul.mubr.bf16.gmra.mrb[0].mxu0 %v507
        %v603 = vpop.f32.mrb[0].mxu0
        %v604 = vadd.f32 %v442, %v603
        %v605 = vpop.f32.mrb[0].mxu0
        %v606 = vpop.f32.mrb[0].mxu0
        %v607 = vadd.f32 %v442, %v606
        %v608 = vpop.f32.mrb[0].mxu0
        %609 = vdwg.mxu0
        %v610 = vmax.f32 %v548, 0.0
        %v611 = vmax.f32 %v551, 0.0
        %v612 = vmax.f32 %v556, 0.0
        %v613 = vmax.f32 %v559, 0.0
        %v614 = vmax.f32 %v564, 0.0
        %v615 = vmax.f32 %v567, 0.0
        %v616 = vmax.f32 %v572, 0.0
        %v617 = vmax.f32 %v575, 0.0
        %v618 = vmax.f32 %v580, 0.0
        %v619 = vmax.f32 %v583, 0.0
        %v620 = vmax.f32 %v588, 0.0
        %v621 = vmax.f32 %v591, 0.0
        %v622 = vmax.f32 %v596, 0.0
        %v623 = vmax.f32 %v599, 0.0
        %v624 = vmax.f32 %v604, 0.0
        %v625 = vmax.f32 %v607, 0.0
        %v626 = vpack.c.bf16 %v611, %v610
        %v627 = vpack.c.bf16 %v613, %v612
        %v628 = vpack.c.bf16 %v615, %v614
        %v629 = vpack.c.bf16 %v617, %v616
        %v630 = vpack.c.bf16 %v619, %v618
        %v631 = vpack.c.bf16 %v621, %v620
        %v632 = vpack.c.bf16 %v623, %v622
        %v633 = vpack.c.bf16 %v625, %v624
        %v642 = vunpack.c.l.b16 %v626
        %v643 = vunpack.c.h.b16 %v626
        %v644 = vunpack.c.l.b16 %v627
        %v645 = vunpack.c.h.b16 %v627
        %v646 = vunpack.c.l.b16 %v628
        %v647 = vunpack.c.h.b16 %v628
        %v648 = vunpack.c.l.b16 %v629
        %v649 = vunpack.c.h.b16 %v629
        %v650 = vunpack.c.l.b16 %v630
        %v651 = vunpack.c.h.b16 %v630
        %v652 = vunpack.c.l.b16 %v631
        %v653 = vunpack.c.h.b16 %v631
        %v654 = vunpack.c.l.b16 %v632
        %v655 = vunpack.c.h.b16 %v632
        %v656 = vunpack.c.l.b16 %v633
        %v657 = vunpack.c.h.b16 %v633
        %v658 = vpack.c.b16 %v642, %v642
        %v659 = vpack.c.b16 %v643, %v643
        %v660 = vpack.c.b16 %v644, %v644
        %v661 = vpack.c.b16 %v645, %v645
        %v662 = vpack.c.b16 %v646, %v646
        %v663 = vpack.c.b16 %v647, %v647
        %v664 = vpack.c.b16 %v648, %v648
        %v665 = vpack.c.b16 %v649, %v649
        %v666 = vpack.c.b16 %v650, %v650
        %v667 = vpack.c.b16 %v651, %v651
        %v668 = vpack.c.b16 %v652, %v652
        %v669 = vpack.c.b16 %v653, %v653
        %v670 = vpack.c.b16 %v654, %v654
        %v671 = vpack.c.b16 %v655, %v655
        %v672 = vpack.c.b16 %v656, %v656
        %v673 = vpack.c.b16 %v657, %v657
        %690 = vst [vmem:[%s354] sm:$0xf] %v658
        %691 = vst [vmem:[%s354 + $0x4] sm:$0xf] %v659
        %692 = vst [vmem:[%s354 + $0x8] sm:$0xf] %v660
        %693 = vst [vmem:[%s354 + $0xc] sm:$0xf] %v661
        %694 = vst [vmem:[%s354 + $0x10] sm:$0xf] %v662
        %695 = vst [vmem:[%s354 + $0x14] sm:$0xf] %v663
        %696 = vst [vmem:[%s354 + $0x18] sm:$0xf] %v664
        %697 = vst [vmem:[%s354 + $0x1c] sm:$0xf] %v665
        %698 = vst [vmem:[%s354 + $0x20] sm:$0xf] %v666
        %699 = vst [vmem:[%s354 + $0x24] sm:$0xf] %v667
        %700 = vst [vmem:[%s354 + $0x28] sm:$0xf] %v668
        %701 = vst [vmem:[%s354 + $0x2c] sm:$0xf] %v669
        %702 = vst [vmem:[%s354 + $0x30] sm:$0xf] %v670
        %703 = vst [vmem:[%s354 + $0x34] sm:$0xf] %v671
        %704 = vst [vmem:[%s354 + $0x38] sm:$0xf] %v672
        %705 = vst [vmem:[%s354 + $0x3c] sm:$0xf] %v673
        %v706 = vld [vmem:[%s3] sm:$0xff]
        %v707 = vld [vmem:[%s3 + $0x8] sm:$0xf]
        %v708 = vld [vmem:[%s3 + $0xc] sm:$0xff]
        %v709 = vld [vmem:[%s3 + $0x14] sm:$0xf]
        %v710 = vld [vmem:[%s3 + $0x18] sm:$0xff]
        %v711 = vld [vmem:[%s3 + $0x20] sm:$0xf]
        %v712 = vld [vmem:[%s3 + $0x24] sm:$0xff]
        %v713 = vld [vmem:[%s3 + $0x2c] sm:$0xf]
        %v714 = vld [vmem:[%s3 + $0x30] sm:$0xff]
        %v715 = vld [vmem:[%s3 + $0x38] sm:$0xf]
        %v716 = vld [vmem:[%s3 + $0x3c] sm:$0xff]
        %v717 = vld [vmem:[%s3 + $0x44] sm:$0xf]
        %v718 = vld [vmem:[%s3 + $0x48] sm:$0xff]
        %v719 = vld [vmem:[%s3 + $0x50] sm:$0xf]
        %v720 = vld [vmem:[%s3 + $0x54] sm:$0xff]
        %v721 = vld [vmem:[%s3 + $0x5c] sm:$0xf]
        %v722 = vld [vmem:[%s3 + $0x60] sm:$0xff]
        %v723 = vld [vmem:[%s3 + $0x68] sm:$0xf]
        %v724 = vld [vmem:[%s3 + $0x6c] sm:$0xff]
        %v725 = vld [vmem:[%s3 + $0x74] sm:$0xf]
        %v726 = vld [vmem:[%s3 + $0x78] sm:$0xff]
        %v727 = vld [vmem:[%s3 + $0x80] sm:$0xf]
        %v728 = vld [vmem:[%s3 + $0x84] sm:$0xff]
        %v729 = vld [vmem:[%s3 + $0x8c] sm:$0xf]
        %v730 = vld [vmem:[%s3 + $0x90] sm:$0xff]
        %v731 = vld [vmem:[%s3 + $0x98] sm:$0xf]
        %v732 = vld [vmem:[%s3 + $0x9c] sm:$0xff]
        %v733 = vld [vmem:[%s3 + $0xa4] sm:$0xf]
        %v734 = vld [vmem:[%s3 + $0xa8] sm:$0xff]
        %v735 = vld [vmem:[%s3 + $0xb0] sm:$0xf]
        %v736 = vld [vmem:[%s3 + $0xb4] sm:$0xff]
        %v737 = vld [vmem:[%s3 + $0xbc] sm:$0xf]
        %v738 = vld [vmem:[%s4] sm:$0x7]
        %v740 = vlaneseq
        %v741 = vshrl.u32 %v740, 7
        %v742 = vsub.s32 0, %v741
        %v743 = vrot.slane %v738, %v742
        %v744 = vlaneseq
        %v745 = vshrl.u32 %v744, 7
        %v746 = vsub.s32 1, %v745
        %v747 = vrot.slane %v738, %v746
        %v748 = vlaneseq
        %v749 = vshrl.u32 %v748, 7
        %v750 = vsub.s32 2, %v749
        %v751 = vrot.slane %v738, %v750
        %v787 = vunpack.c.l.b16 %v706
        %v788 = vunpack.c.h.b16 %v706
        %v789 = vunpack.c.l.b16 %v707
        %v790 = vunpack.c.l.b16 %v708
        %v791 = vunpack.c.h.b16 %v708
        %v792 = vunpack.c.l.b16 %v709
        %v793 = vunpack.c.l.b16 %v710
        %v794 = vunpack.c.h.b16 %v710
        %v795 = vunpack.c.l.b16 %v711
        %v796 = vunpack.c.l.b16 %v712
        %v797 = vunpack.c.h.b16 %v712
        %v798 = vunpack.c.l.b16 %v713
        %v799 = vunpack.c.l.b16 %v714
        %v800 = vunpack.c.h.b16 %v714
        %v801 = vunpack.c.l.b16 %v715
        %v802 = vunpack.c.l.b16 %v716
        %v803 = vunpack.c.h.b16 %v716
        %v804 = vunpack.c.l.b16 %v717
        %v805 = vunpack.c.l.b16 %v718
        %v806 = vunpack.c.h.b16 %v718
        %v807 = vunpack.c.l.b16 %v719
        %v808 = vunpack.c.l.b16 %v720
        %v809 = vunpack.c.h.b16 %v720
        %v810 = vunpack.c.l.b16 %v721
        %v811 = vunpack.c.l.b16 %v722
        %v812 = vunpack.c.h.b16 %v722
        %v813 = vunpack.c.l.b16 %v723
        %v814 = vunpack.c.l.b16 %v724
        %v815 = vunpack.c.h.b16 %v724
        %v816 = vunpack.c.l.b16 %v725
        %v817 = vunpack.c.l.b16 %v726
        %v818 = vunpack.c.h.b16 %v726
        %v819 = vunpack.c.l.b16 %v727
        %v820 = vunpack.c.l.b16 %v728
        %v821 = vunpack.c.h.b16 %v728
        %v822 = vunpack.c.l.b16 %v729
        %v823 = vunpack.c.l.b16 %v730
        %v824 = vunpack.c.h.b16 %v730
        %v825 = vunpack.c.l.b16 %v731
        %v826 = vunpack.c.l.b16 %v732
        %v827 = vunpack.c.h.b16 %v732
        %v828 = vunpack.c.l.b16 %v733
        %v829 = vunpack.c.l.b16 %v734
        %v830 = vunpack.c.h.b16 %v734
        %v831 = vunpack.c.l.b16 %v735
        %v832 = vunpack.c.l.b16 %v736
        %v833 = vunpack.c.h.b16 %v736
        %v834 = vunpack.c.l.b16 %v737
        %v835 = vpack.c.b16 %v790, %v787
        %v836 = vpack.c.b16 %v791, %v788
        %v837 = vpack.c.b16 %v792, %v789
        %v838 = vpack.c.b16 %v796, %v793
        %v839 = vpack.c.b16 %v797, %v794
        %v840 = vpack.c.b16 %v798, %v795
        %v841 = vpack.c.b16 %v802, %v799
        %v842 = vpack.c.b16 %v803, %v800
        %v843 = vpack.c.b16 %v804, %v801
        %v844 = vpack.c.b16 %v808, %v805
        %v845 = vpack.c.b16 %v809, %v806
        %v846 = vpack.c.b16 %v810, %v807
        %v847 = vpack.c.b16 %v814, %v811
        %v848 = vpack.c.b16 %v815, %v812
        %v849 = vpack.c.b16 %v816, %v813
        %v850 = vpack.c.b16 %v820, %v817
        %v851 = vpack.c.b16 %v821, %v818
        %v852 = vpack.c.b16 %v822, %v819
        %v853 = vpack.c.b16 %v826, %v823
        %v854 = vpack.c.b16 %v827, %v824
        %v855 = vpack.c.b16 %v828, %v825
        %v856 = vpack.c.b16 %v832, %v829
        %v857 = vpack.c.b16 %v833, %v830
        %v858 = vpack.c.b16 %v834, %v831
        %883 = vmatprep.subr.bf16.mxu0 %v836
        %884 = vmatpush1.bf16.msra.mxu0 %v835
        %885 = vmatprep.subr.bf16.mxu0 %v839
        %886 = vmatpush1.bf16.msra.mxu0 %v838
        %887 = vmatprep.subr.bf16.mxu0 %v842
        %888 = vmatpush1.bf16.msra.mxu0 %v841
        %889 = vmatprep.subr.bf16.mxu0 %v845
        %890 = vmatpush1.bf16.msra.mxu0 %v844
        %891 = vmatprep.subr.bf16.mxu0 %v848
        %892 = vmatpush1.bf16.msra.mxu0 %v847
        %893 = vmatprep.subr.bf16.mxu0 %v851
        %894 = vmatpush1.bf16.msra.mxu0 %v850
        %895 = vmatprep.subr.bf16.mxu0 %v854
        %896 = vmatpush1.bf16.msra.mxu0 %v853
        %897 = vmatprep.subr.bf16.mxu0 %v857
        %898 = vmatpush1.bf16.msra.mxu0 %v856
        %899 = vmatprep.subr.bf16.mxu0 0
        %900 = vmatpush1.bf16.msra.mxu0 0
        %901 = vmatprep.subr.bf16.mxu0 0
        %902 = vmatpush1.bf16.msra.mxu0 0
        %903 = vmatprep.subr.bf16.mxu0 0
        %904 = vmatpush1.bf16.msra.mxu0 0
        %905 = vmatprep.subr.bf16.mxu0 0
        %906 = vmatpush1.bf16.msra.mxu0 0
        %907 = vmatprep.subr.bf16.mxu0 0
        %908 = vmatpush1.bf16.msra.mxu0 0
        %909 = vmatprep.subr.bf16.mxu0 0
        %910 = vmatpush1.bf16.msra.mxu0 0
        %911 = vmatprep.subr.bf16.mxu0 0
        %912 = vmatpush1.bf16.msra.mxu0 0
        %913 = vmatprep.subr.bf16.mxu0 0
        %914 = vmatpush1.bf16.msra.mxu0 0
        %915 = vmatprep.mubr.bf16.mxu0 0
        %916 = vmatmul.mubr.bf16.gmra.mrb[0].mxu0 %v626
        %v917 = vpop.f32.mrb[0].mxu0
        %v918 = vadd.f32 %v743, %v917
        %v919 = vpop.f32.mrb[0].mxu0
        %v920 = vadd.f32 %v747, %v919
        %v921 = vpop.f32.mrb[0].mxu0
        %v922 = vadd.f32 %v743, %v921
        %v923 = vpop.f32.mrb[0].mxu0
        %v924 = vadd.f32 %v747, %v923
        %925 = vmatprep.mubr.bf16.mxu0 0
        %926 = vmatmul.mubr.bf16.gmra.mrb[0].mxu0 %v627
        %v927 = vpop.f32.mrb[0].mxu0
        %v928 = vadd.f32 %v743, %v927
        %v929 = vpop.f32.mrb[0].mxu0
        %v930 = vadd.f32 %v747, %v929
        %v931 = vpop.f32.mrb[0].mxu0
        %v932 = vadd.f32 %v743, %v931
        %v933 = vpop.f32.mrb[0].mxu0
        %v934 = vadd.f32 %v747, %v933
        %935 = vmatprep.mubr.bf16.mxu0 0
        %936 = vmatmul.mubr.bf16.gmra.mrb[0].mxu0 %v628
        %v937 = vpop.f32.mrb[0].mxu0
        %v938 = vadd.f32 %v743, %v937
        %v939 = vpop.f32.mrb[0].mxu0
        %v940 = vadd.f32 %v747, %v939
        %v941 = vpop.f32.mrb[0].mxu0
        %v942 = vadd.f32 %v743, %v941
        %v943 = vpop.f32.mrb[0].mxu0
        %v944 = vadd.f32 %v747, %v943
        %945 = vmatprep.mubr.bf16.mxu0 0
        %946 = vmatmul.mubr.bf16.gmra.mrb[0].mxu0 %v629
        %v947 = vpop.f32.mrb[0].mxu0
        %v948 = vadd.f32 %v743, %v947
        %v949 = vpop.f32.mrb[0].mxu0
        %v950 = vadd.f32 %v747, %v949
        %v951 = vpop.f32.mrb[0].mxu0
        %v952 = vadd.f32 %v743, %v951
        %v953 = vpop.f32.mrb[0].mxu0
        %v954 = vadd.f32 %v747, %v953
        %955 = vmatprep.mubr.bf16.mxu0 0
        %956 = vmatmul.mubr.bf16.gmra.mrb[0].mxu0 %v630
        %v957 = vpop.f32.mrb[0].mxu0
        %v958 = vadd.f32 %v743, %v957
        %v959 = vpop.f32.mrb[0].mxu0
        %v960 = vadd.f32 %v747, %v959
        %v961 = vpop.f32.mrb[0].mxu0
        %v962 = vadd.f32 %v743, %v961
        %v963 = vpop.f32.mrb[0].mxu0
        %v964 = vadd.f32 %v747, %v963
        %965 = vmatprep.mubr.bf16.mxu0 0
        %966 = vmatmul.mubr.bf16.gmra.mrb[0].mxu0 %v631
        %v967 = vpop.f32.mrb[0].mxu0
        %v968 = vadd.f32 %v743, %v967
        %v969 = vpop.f32.mrb[0].mxu0
        %v970 = vadd.f32 %v747, %v969
        %v971 = vpop.f32.mrb[0].mxu0
        %v972 = vadd.f32 %v743, %v971
        %v973 = vpop.f32.mrb[0].mxu0
        %v974 = vadd.f32 %v747, %v973
        %975 = vmatprep.mubr.bf16.mxu0 0
        %976 = vmatmul.mubr.bf16.gmra.mrb[0].mxu0 %v632
        %v977 = vpop.f32.mrb[0].mxu0
        %v978 = vadd.f32 %v743, %v977
        %v979 = vpop.f32.mrb[0].mxu0
        %v980 = vadd.f32 %v747, %v979
        %v981 = vpop.f32.mrb[0].mxu0
        %v982 = vadd.f32 %v743, %v981
        %v983 = vpop.f32.mrb[0].mxu0
        %v984 = vadd.f32 %v747, %v983
        %985 = vmatprep.mubr.bf16.mxu0 0
        %986 = vmatmul.mubr.bf16.gmra.mrb[0].mxu0 %v633
        %v987 = vpop.f32.mrb[0].mxu0
        %v988 = vadd.f32 %v743, %v987
        %v989 = vpop.f32.mrb[0].mxu0
        %v990 = vadd.f32 %v747, %v989
        %v991 = vpop.f32.mrb[0].mxu0
        %v992 = vadd.f32 %v743, %v991
        %v993 = vpop.f32.mrb[0].mxu0
        %v994 = vadd.f32 %v747, %v993
        %995 = vdwg.mxu0
        %996 = vmatprep.subr.bf16.mxu0 0
        %997 = vmatpush1.bf16.msra.mxu0 %v837
        %998 = vmatprep.subr.bf16.mxu0 0
        %999 = vmatpush1.bf16.msra.mxu0 %v840
        %1000 = vmatprep.subr.bf16.mxu0 0
        %1001 = vmatpush1.bf16.msra.mxu0 %v843
        %1002 = vmatprep.subr.bf16.mxu0 0
        %1003 = vmatpush1.bf16.msra.mxu0 %v846
        %1004 = vmatprep.subr.bf16.mxu0 0
        %1005 = vmatpush1.bf16.msra.mxu0 %v849
        %1006 = vmatprep.subr.bf16.mxu0 0
        %1007 = vmatpush1.bf16.msra.mxu0 %v852
        %1008 = vmatprep.subr.bf16.mxu0 0
        %1009 = vmatpush1.bf16.msra.mxu0 %v855
        %1010 = vmatprep.subr.bf16.mxu0 0
        %1011 = vmatpush1.bf16.msra.mxu0 %v858
        %1012 = vmatprep.subr.bf16.mxu0 0
        %1013 = vmatpush1.bf16.msra.mxu0 0
        %1014 = vmatprep.subr.bf16.mxu0 0
        %1015 = vmatpush1.bf16.msra.mxu0 0
        %1016 = vmatprep.subr.bf16.mxu0 0
        %1017 = vmatpush1.bf16.msra.mxu0 0
        %1018 = vmatprep.subr.bf16.mxu0 0
        %1019 = vmatpush1.bf16.msra.mxu0 0
        %1020 = vmatprep.subr.bf16.mxu0 0
        %1021 = vmatpush1.bf16.msra.mxu0 0
        %1022 = vmatprep.subr.bf16.mxu0 0
        %1023 = vmatpush1.bf16.msra.mxu0 0
        %1024 = vmatprep.subr.bf16.mxu0 0
        %1025 = vmatpush1.bf16.msra.mxu0 0
        %1026 = vmatprep.subr.bf16.mxu0 0
        %1027 = vmatpush1.bf16.msra.mxu0 0
        %1028 = vmatprep.mubr.bf16.mxu0 0
        %1029 = vmatmul.mubr.bf16.gmra.mrb[0].mxu0 %v626
        %v1030 = vpop.f32.mrb[0].mxu0
        %v1031 = vadd.f32 %v751, %v1030
        %v1032 = vpop.f32.mrb[0].mxu0
        %v1033 = vpop.f32.mrb[0].mxu0
        %v1034 = vadd.f32 %v751, %v1033
        %v1035 = vpop.f32.mrb[0].mxu0
        %1036 = vmatprep.mubr.bf16.mxu0 0
        %1037 = vmatmul.mubr.bf16.gmra.mrb[0].mxu0 %v627
        %v1038 = vpop.f32.mrb[0].mxu0
        %v1039 = vadd.f32 %v751, %v1038
        %v1040 = vpop.f32.mrb[0].mxu0
        %v1041 = vpop.f32.mrb[0].mxu0
        %v1042 = vadd.f32 %v751, %v1041
        %v1043 = vpop.f32.mrb[0].mxu0
        %1044 = vmatprep.mubr.bf16.mxu0 0
        %1045 = vmatmul.mubr.bf16.gmra.mrb[0].mxu0 %v628
        %v1046 = vpop.f32.mrb[0].mxu0
        %v1047 = vadd.f32 %v751, %v1046
        %v1048 = vpop.f32.mrb[0].mxu0
        %v1049 = vpop.f32.mrb[0].mxu0
        %v1050 = vadd.f32 %v751, %v1049
        %v1051 = vpop.f32.mrb[0].mxu0
        %1052 = vmatprep.mubr.bf16.mxu0 0
        %1053 = vmatmul.mubr.bf16.gmra.mrb[0].mxu0 %v629
        %v1054 = vpop.f32.mrb[0].mxu0
        %v1055 = vadd.f32 %v751, %v1054
        %v1056 = vpop.f32.mrb[0].mxu0
        %v1057 = vpop.f32.mrb[0].mxu0
        %v1058 = vadd.f32 %v751, %v1057
        %v1059 = vpop.f32.mrb[0].mxu0
        %1060 = vmatprep.mubr.bf16.mxu0 0
        %1061 = vmatmul.mubr.bf16.gmra.mrb[0].mxu0 %v630
        %v1062 = vpop.f32.mrb[0].mxu0
        %v1063 = vadd.f32 %v751, %v1062
        %v1064 = vpop.f32.mrb[0].mxu0
        %v1065 = vpop.f32.mrb[0].mxu0
        %v1066 = vadd.f32 %v751, %v1065
        %v1067 = vpop.f32.mrb[0].mxu0
        %1068 = vmatprep.mubr.bf16.mxu0 0
        %1069 = vmatmul.mubr.bf16.gmra.mrb[0].mxu0 %v631
        %v1070 = vpop.f32.mrb[0].mxu0
        %v1071 = vadd.f32 %v751, %v1070
        %v1072 = vpop.f32.mrb[0].mxu0
        %v1073 = vpop.f32.mrb[0].mxu0
        %v1074 = vadd.f32 %v751, %v1073
        %v1075 = vpop.f32.mrb[0].mxu0
        %1076 = vmatprep.mubr.bf16.mxu0 0
        %1077 = vmatmul.mubr.bf16.gmra.mrb[0].mxu0 %v632
        %v1078 = vpop.f32.mrb[0].mxu0
        %v1079 = vadd.f32 %v751, %v1078
        %v1080 = vpop.f32.mrb[0].mxu0
        %v1081 = vpop.f32.mrb[0].mxu0
        %v1082 = vadd.f32 %v751, %v1081
        %v1083 = vpop.f32.mrb[0].mxu0
        %1084 = vmatprep.mubr.bf16.mxu0 0
        %1085 = vmatmul.mubr.bf16.gmra.mrb[0].mxu0 %v633
        %v1086 = vpop.f32.mrb[0].mxu0
        %v1087 = vadd.f32 %v751, %v1086
        %v1088 = vpop.f32.mrb[0].mxu0
        %v1089 = vpop.f32.mrb[0].mxu0
        %v1090 = vadd.f32 %v751, %v1089
        %v1091 = vpop.f32.mrb[0].mxu0
        %1092 = vdwg.mxu0
        %v1093 = vpack.c.bf16 %v924, %v920
        %v1094 = vpack.c.bf16 %v934, %v930
        %v1095 = vpack.c.bf16 %v944, %v940
        %v1096 = vpack.c.bf16 %v954, %v950
        %v1097 = vpack.c.bf16 %v964, %v960
        %v1098 = vpack.c.bf16 %v974, %v970
        %v1099 = vpack.c.bf16 %v984, %v980
        %v1100 = vpack.c.bf16 %v994, %v990
        %v1101 = vpack.c.bf16 %v1034, %v1031
        %v1102 = vpack.c.bf16 %v1042, %v1039
        %v1103 = vpack.c.bf16 %v1050, %v1047
        %v1104 = vpack.c.bf16 %v1058, %v1055
        %v1105 = vpack.c.bf16 %v1066, %v1063
        %v1106 = vpack.c.bf16 %v1074, %v1071
        %v1107 = vpack.c.bf16 %v1082, %v1079
        %v1108 = vpack.c.bf16 %v1090, %v1087
        %v1109 = vld [vmem:[%s361] sm:$0xff]
        %v1110 = vld [vmem:[%s361 + $0x8] sm:$0xff]
        %v1111 = vld [vmem:[%s361 + $0x10] sm:$0xff]
        %v1112 = vld [vmem:[%s361 + $0x18] sm:$0xff]
        %v1113 = vld [vmem:[%s361 + $0x20] sm:$0xff]
        %v1114 = vld [vmem:[%s361 + $0x28] sm:$0xff]
        %v1115 = vld [vmem:[%s361 + $0x30] sm:$0xff]
        %v1116 = vld [vmem:[%s361 + $0x38] sm:$0xff]
        %v1117 = vld [vmem:[%s361 + $0x40] sm:$0xff]
        %v1118 = vld [vmem:[%s361 + $0x48] sm:$0xff]
        %v1119 = vld [vmem:[%s361 + $0x50] sm:$0xff]
        %v1120 = vld [vmem:[%s361 + $0x58] sm:$0xff]
        %v1121 = vld [vmem:[%s361 + $0x60] sm:$0xff]
        %v1122 = vld [vmem:[%s361 + $0x68] sm:$0xff]
        %v1123 = vld [vmem:[%s361 + $0x70] sm:$0xff]
        %v1124 = vld [vmem:[%s361 + $0x78] sm:$0xff]
        %1125 = vxpose.xlu0.c.b16.start [1/8] %v1093, 128
        %1126 = vxpose.xlu0.c.b16.cont [2/8] %v1094, 128
        %1127 = vxpose.xlu0.c.b16.cont [3/8] %v1095, 128
        %1128 = vxpose.xlu0.c.b16.cont [4/8] %v1096, 128
        %1129 = vxpose.xlu0.c.b16.cont [5/8] %v1097, 128
        %1130 = vxpose.xlu0.c.b16.cont [6/8] %v1098, 128
        %1131 = vxpose.xlu0.c.b16.cont [7/8] %v1099, 128
        %1132 = vxpose.xlu0.c.b16.end [8/8] %v1100, 128
        %v1133 = vpop.trf.xlu0
        %v1134 = vpop.trf.xlu0
        %v1135 = vpop.trf.xlu0
        %v1136 = vpop.trf.xlu0
        %v1137 = vpop.trf.xlu0
        %v1138 = vpop.trf.xlu0
        %v1139 = vpop.trf.xlu0
        %v1140 = vpop.trf.xlu0
        %1141 = vmatprep.subr.bf16.mxu0 0
        %1142 = vmatpush1.bf16.msra.mxu0 %v1101
        %1143 = vmatprep.subr.bf16.mxu0 0
        %1144 = vmatpush1.bf16.msra.mxu0 %v1102
        %1145 = vmatprep.subr.bf16.mxu0 0
        %1146 = vmatpush1.bf16.msra.mxu0 %v1103
        %1147 = vmatprep.subr.bf16.mxu0 0
        %1148 = vmatpush1.bf16.msra.mxu0 %v1104
        %1149 = vmatprep.subr.bf16.mxu0 0
        %1150 = vmatpush1.bf16.msra.mxu0 %v1105
        %1151 = vmatprep.subr.bf16.mxu0 0
        %1152 = vmatpush1.bf16.msra.mxu0 %v1106
        %1153 = vmatprep.subr.bf16.mxu0 0
        %1154 = vmatpush1.bf16.msra.mxu0 %v1107
        %1155 = vmatprep.subr.bf16.mxu0 0
        %1156 = vmatpush1.bf16.msra.mxu0 %v1108
        %1157 = vmatprep.subr.bf16.mxu0 0
        %1158 = vmatpush1.bf16.msra.mxu0 0
        %1159 = vmatprep.subr.bf16.mxu0 0
        %1160 = vmatpush1.bf16.msra.mxu0 0
        %1161 = vmatprep.subr.bf16.mxu0 0
        %1162 = vmatpush1.bf16.msra.mxu0 0
        %1163 = vmatprep.subr.bf16.mxu0 0
        %1164 = vmatpush1.bf16.msra.mxu0 0
        %1165 = vmatprep.subr.bf16.mxu0 0
        %1166 = vmatpush1.bf16.msra.mxu0 0
        %1167 = vmatprep.subr.bf16.mxu0 0
        %1168 = vmatpush1.bf16.msra.mxu0 0
        %1169 = vmatprep.subr.bf16.mxu0 0
        %1170 = vmatpush1.bf16.msra.mxu0 0
        %1171 = vmatprep.subr.bf16.mxu0 0
        %1172 = vmatpush1.bf16.msra.mxu0 0
        %1173 = vmatprep.mubr.bf16.mxu0 0
        %1174 = vmatmul.mubr.bf16.gmra.mrb[0].mxu0 %v1133
        %v1175 = vpop.f32.mrb[0].mxu0
        %v1176 = vadd.f32 0.0, %v1175
        %v1177 = vpop.f32.mrb[0].mxu0
        %v1178 = vpop.f32.mrb[0].mxu0
        %v1179 = vadd.f32 0.0, %v1178
        %v1180 = vpop.f32.mrb[0].mxu0
        %1181 = vmatprep.mubr.bf16.mxu0 0
        %1182 = vmatmul.mubr.bf16.gmra.mrb[0].mxu0 %v1134
        %v1183 = vpop.f32.mrb[0].mxu0
        %v1184 = vadd.f32 0.0, %v1183
        %v1185 = vpop.f32.mrb[0].mxu0
        %v1186 = vpop.f32.mrb[0].mxu0
        %v1187 = vadd.f32 0.0, %v1186
        %v1188 = vpop.f32.mrb[0].mxu0
        %1189 = vmatprep.mubr.bf16.mxu0 0
        %1190 = vmatmul.mubr.bf16.gmra.mrb[0].mxu0 %v1135
        %v1191 = vpop.f32.mrb[0].mxu0
        %v1192 = vadd.f32 0.0, %v1191
        %v1193 = vpop.f32.mrb[0].mxu0
        %v1194 = vpop.f32.mrb[0].mxu0
        %v1195 = vadd.f32 0.0, %v1194
        %v1196 = vpop.f32.mrb[0].mxu0
        %1197 = vmatprep.mubr.bf16.mxu0 0
        %1198 = vmatmul.mubr.bf16.gmra.mrb[0].mxu0 %v1136
        %v1199 = vpop.f32.mrb[0].mxu0
        %v1200 = vadd.f32 0.0, %v1199
        %v1201 = vpop.f32.mrb[0].mxu0
        %v1202 = vpop.f32.mrb[0].mxu0
        %v1203 = vadd.f32 0.0, %v1202
        %v1204 = vpop.f32.mrb[0].mxu0
        %1205 = vmatprep.mubr.bf16.mxu0 0
        %1206 = vmatmul.mubr.bf16.gmra.mrb[0].mxu0 %v1137
        %v1207 = vpop.f32.mrb[0].mxu0
        %v1208 = vadd.f32 0.0, %v1207
        %v1209 = vpop.f32.mrb[0].mxu0
        %v1210 = vpop.f32.mrb[0].mxu0
        %v1211 = vadd.f32 0.0, %v1210
        %v1212 = vpop.f32.mrb[0].mxu0
        %1213 = vmatprep.mubr.bf16.mxu0 0
        %1214 = vmatmul.mubr.bf16.gmra.mrb[0].mxu0 %v1138
        %v1215 = vpop.f32.mrb[0].mxu0
        %v1216 = vadd.f32 0.0, %v1215
        %v1217 = vpop.f32.mrb[0].mxu0
        %v1218 = vpop.f32.mrb[0].mxu0
        %v1219 = vadd.f32 0.0, %v1218
        %v1220 = vpop.f32.mrb[0].mxu0
        %1221 = vmatprep.mubr.bf16.mxu0 0
        %1222 = vmatmul.mubr.bf16.gmra.mrb[0].mxu0 %v1139
        %v1223 = vpop.f32.mrb[0].mxu0
        %v1224 = vadd.f32 0.0, %v1223
        %v1225 = vpop.f32.mrb[0].mxu0
        %v1226 = vpop.f32.mrb[0].mxu0
        %v1227 = vadd.f32 0.0, %v1226
        %v1228 = vpop.f32.mrb[0].mxu0
        %1229 = vmatprep.mubr.bf16.mxu0 0
        %1230 = vmatmul.mubr.bf16.gmra.mrb[0].mxu0 %v1140
        %v1231 = vpop.f32.mrb[0].mxu0
        %v1232 = vadd.f32 0.0, %v1231
        %v1233 = vpop.f32.mrb[0].mxu0
        %v1234 = vpop.f32.mrb[0].mxu0
        %v1235 = vadd.f32 0.0, %v1234
        %v1236 = vpop.f32.mrb[0].mxu0
        %1237 = vdwg.mxu0
        %v1238 = vadd.f32 %v1109, %v1176
        %v1239 = vadd.f32 %v1110, %v1179
        %v1240 = vadd.f32 %v1111, %v1184
        %v1241 = vadd.f32 %v1112, %v1187
        %v1242 = vadd.f32 %v1113, %v1192
        %v1243 = vadd.f32 %v1114, %v1195
        %v1244 = vadd.f32 %v1115, %v1200
        %v1245 = vadd.f32 %v1116, %v1203
        %v1246 = vadd.f32 %v1117, %v1208
        %v1247 = vadd.f32 %v1118, %v1211
        %v1248 = vadd.f32 %v1119, %v1216
        %v1249 = vadd.f32 %v1120, %v1219
        %v1250 = vadd.f32 %v1121, %v1224
        %v1251 = vadd.f32 %v1122, %v1227
        %v1252 = vadd.f32 %v1123, %v1232
        %v1253 = vadd.f32 %v1124, %v1235
        %1254 = vst [vmem:[%s361] sm:$0xff] %v1238
        %1255 = vst [vmem:[%s361 + $0x8] sm:$0xff] %v1239
        %1256 = vst [vmem:[%s361 + $0x10] sm:$0xff] %v1240
        %1257 = vst [vmem:[%s361 + $0x18] sm:$0xff] %v1241
        %1258 = vst [vmem:[%s361 + $0x20] sm:$0xff] %v1242
        %1259 = vst [vmem:[%s361 + $0x28] sm:$0xff] %v1243
        %1260 = vst [vmem:[%s361 + $0x30] sm:$0xff] %v1244
        %1261 = vst [vmem:[%s361 + $0x38] sm:$0xff] %v1245
        %1262 = vst [vmem:[%s361 + $0x40] sm:$0xff] %v1246
        %1263 = vst [vmem:[%s361 + $0x48] sm:$0xff] %v1247
        %1264 = vst [vmem:[%s361 + $0x50] sm:$0xff] %v1248
        %1265 = vst [vmem:[%s361 + $0x58] sm:$0xff] %v1249
        %1266 = vst [vmem:[%s361 + $0x60] sm:$0xff] %v1250
        %1267 = vst [vmem:[%s361 + $0x68] sm:$0xff] %v1251
        %1268 = vst [vmem:[%s361 + $0x70] sm:$0xff] %v1252
        %1269 = vst [vmem:[%s361 + $0x78] sm:$0xff] %v1253
        %v1270 = vld [vmem:[%s367] sm:$0x1]
        %v1271 = vadd.f32 %v920, %v924
        %v1272 = vadd.f32 %v1271, %v930
        %v1273 = vadd.f32 %v1272, %v934
        %v1274 = vadd.f32 %v1273, %v940
        %v1275 = vadd.f32 %v1274, %v944
        %v1276 = vadd.f32 %v1275, %v950
        %v1277 = vadd.f32 %v1276, %v954
        %v1278 = vadd.f32 %v1277, %v960
        %v1279 = vadd.f32 %v1278, %v964
        %v1280 = vadd.f32 %v1279, %v970
        %v1281 = vadd.f32 %v1280, %v974
        %v1282 = vadd.f32 %v1281, %v980
        %v1283 = vadd.f32 %v1282, %v984
        %v1284 = vadd.f32 %v1283, %v990
        %v1285 = vadd.f32 %v1284, %v994
        %v1286 = vrot.slane %v1285, 4
        %v1287 = vadd.f32 %v1285, %v1286
        %v1288 = vrot.slane %v1287, 2
        %v1289 = vadd.f32 %v1287, %v1288
        %v1290 = vrot.slane %v1289, 1
        %v1291 = vadd.f32 %v1289, %v1290
        %v1292 = vadd.f32 %v1270, %v1291
        %1293 = vst [vmem:[%s367] sm:$0x1] %v1292
        %v1294 = vld [vmem:[%s391] sm:$0x1]
        %v1295 = vmul.f32 %v918, %v918
        %v1296 = vmul.f32 %v922, %v922
        %v1297 = vmul.f32 %v928, %v928
        %v1298 = vmul.f32 %v932, %v932
        %v1299 = vmul.f32 %v938, %v938
        %v1300 = vmul.f32 %v942, %v942
        %v1301 = vmul.f32 %v948, %v948
        %v1302 = vmul.f32 %v952, %v952
        %v1303 = vmul.f32 %v958, %v958
        %v1304 = vmul.f32 %v962, %v962
        %v1305 = vmul.f32 %v968, %v968
        %v1306 = vmul.f32 %v972, %v972
        %v1307 = vmul.f32 %v978, %v978
        %v1308 = vmul.f32 %v982, %v982
        %v1309 = vmul.f32 %v988, %v988
        %v1310 = vmul.f32 %v992, %v992
        %1311 = vadd.xlane.f32.xlu0 %v1295
        %v1312 = vpop.xlane.xlu0 %1311
        %1313 = vadd.xlane.f32.xlu0 %v1296
        %v1314 = vpop.xlane.xlu0 %1313
        %1315 = vadd.xlane.f32.xlu0 %v1297
        %v1316 = vpop.xlane.xlu0 %1315
        %1317 = vadd.xlane.f32.xlu0 %v1298
        %v1318 = vpop.xlane.xlu0 %1317
        %1319 = vadd.xlane.f32.xlu0 %v1299
        %v1320 = vpop.xlane.xlu0 %1319
        %1321 = vadd.xlane.f32.xlu0 %v1300
        %v1322 = vpop.xlane.xlu0 %1321
        %1323 = vadd.xlane.f32.xlu0 %v1301
        %v1324 = vpop.xlane.xlu0 %1323
        %1325 = vadd.xlane.f32.xlu0 %v1302
        %v1326 = vpop.xlane.xlu0 %1325
        %1327 = vadd.xlane.f32.xlu0 %v1303
        %v1328 = vpop.xlane.xlu0 %1327
        %1329 = vadd.xlane.f32.xlu0 %v1304
        %v1330 = vpop.xlane.xlu0 %1329
        %1331 = vadd.xlane.f32.xlu0 %v1305
        %v1332 = vpop.xlane.xlu0 %1331
        %1333 = vadd.xlane.f32.xlu0 %v1306
        %v1334 = vpop.xlane.xlu0 %1333
        %1335 = vadd.xlane.f32.xlu0 %v1307
        %v1336 = vpop.xlane.xlu0 %1335
        %1337 = vadd.xlane.f32.xlu0 %v1308
        %v1338 = vpop.xlane.xlu0 %1337
        %1339 = vadd.xlane.f32.xlu0 %v1309
        %v1340 = vpop.xlane.xlu0 %1339
        %1341 = vadd.xlane.f32.xlu0 %v1310
        %v1342 = vpop.xlane.xlu0 %1341
        %v1343 = vadd.f32 %v1312, %v1314
        %v1344 = vadd.f32 %v1343, %v1316
        %v1345 = vadd.f32 %v1344, %v1318
        %v1346 = vadd.f32 %v1345, %v1320
        %v1347 = vadd.f32 %v1346, %v1322
        %v1348 = vadd.f32 %v1347, %v1324
        %v1349 = vadd.f32 %v1348, %v1326
        %v1350 = vadd.f32 %v1349, %v1328
        %v1351 = vadd.f32 %v1350, %v1330
        %v1352 = vadd.f32 %v1351, %v1332
        %v1353 = vadd.f32 %v1352, %v1334
        %v1354 = vadd.f32 %v1353, %v1336
        %v1355 = vadd.f32 %v1354, %v1338
        %v1356 = vadd.f32 %v1355, %v1340
        %v1357 = vadd.f32 %v1356, %v1342
        %v1358 = vrot.slane %v1357, 4
        %v1359 = vadd.f32 %v1357, %v1358
        %v1360 = vrot.slane %v1359, 2
        %v1361 = vadd.f32 %v1359, %v1360
        %v1362 = vrot.slane %v1361, 1
        %v1363 = vadd.f32 %v1361, %v1362
        %v1364 = vadd.f32 %v1294, %v1363
        %vm1365 = vcmask 0
        %1366 = vst.msk [vmem:[%s391] sm:$0x1] %vm1365, %v1364
        %v1367 = vld [vmem:[%s394] sm:$0x1]
        %v1368 = vmul.f32 %v920, %v920
        %v1369 = vmul.f32 %v924, %v924
        %v1370 = vmul.f32 %v930, %v930
        %v1371 = vmul.f32 %v934, %v934
        %v1372 = vmul.f32 %v940, %v940
        %v1373 = vmul.f32 %v944, %v944
        %v1374 = vmul.f32 %v950, %v950
        %v1375 = vmul.f32 %v954, %v954
        %v1376 = vmul.f32 %v960, %v960
        %v1377 = vmul.f32 %v964, %v964
        %v1378 = vmul.f32 %v970, %v970
        %v1379 = vmul.f32 %v974, %v974
        %v1380 = vmul.f32 %v980, %v980
        %v1381 = vmul.f32 %v984, %v984
        %v1382 = vmul.f32 %v990, %v990
        %v1383 = vmul.f32 %v994, %v994
        %1384 = vadd.xlane.f32.xlu0 %v1368
        %v1385 = vpop.xlane.xlu0 %1384
        %1386 = vadd.xlane.f32.xlu0 %v1369
        %v1387 = vpop.xlane.xlu0 %1386
        %1388 = vadd.xlane.f32.xlu0 %v1370
        %v1389 = vpop.xlane.xlu0 %1388
        %1390 = vadd.xlane.f32.xlu0 %v1371
        %v1391 = vpop.xlane.xlu0 %1390
        %1392 = vadd.xlane.f32.xlu0 %v1372
        %v1393 = vpop.xlane.xlu0 %1392
        %1394 = vadd.xlane.f32.xlu0 %v1373
        %v1395 = vpop.xlane.xlu0 %1394
        %1396 = vadd.xlane.f32.xlu0 %v1374
        %v1397 = vpop.xlane.xlu0 %1396
        %1398 = vadd.xlane.f32.xlu0 %v1375
        %v1399 = vpop.xlane.xlu0 %1398
        %1400 = vadd.xlane.f32.xlu0 %v1376
        %v1401 = vpop.xlane.xlu0 %1400
        %1402 = vadd.xlane.f32.xlu0 %v1377
        %v1403 = vpop.xlane.xlu0 %1402
        %1404 = vadd.xlane.f32.xlu0 %v1378
        %v1405 = vpop.xlane.xlu0 %1404
        %1406 = vadd.xlane.f32.xlu0 %v1379
        %v1407 = vpop.xlane.xlu0 %1406
        %1408 = vadd.xlane.f32.xlu0 %v1380
        %v1409 = vpop.xlane.xlu0 %1408
        %1410 = vadd.xlane.f32.xlu0 %v1381
        %v1411 = vpop.xlane.xlu0 %1410
        %1412 = vadd.xlane.f32.xlu0 %v1382
        %v1413 = vpop.xlane.xlu0 %1412
        %1414 = vadd.xlane.f32.xlu0 %v1383
        %v1415 = vpop.xlane.xlu0 %1414
        %v1416 = vadd.f32 %v1385, %v1387
        %v1417 = vadd.f32 %v1416, %v1389
        %v1418 = vadd.f32 %v1417, %v1391
        %v1419 = vadd.f32 %v1418, %v1393
        %v1420 = vadd.f32 %v1419, %v1395
        %v1421 = vadd.f32 %v1420, %v1397
        %v1422 = vadd.f32 %v1421, %v1399
        %v1423 = vadd.f32 %v1422, %v1401
        %v1424 = vadd.f32 %v1423, %v1403
        %v1425 = vadd.f32 %v1424, %v1405
        %v1426 = vadd.f32 %v1425, %v1407
        %v1427 = vadd.f32 %v1426, %v1409
        %v1428 = vadd.f32 %v1427, %v1411
        %v1429 = vadd.f32 %v1428, %v1413
        %v1430 = vadd.f32 %v1429, %v1415
        %v1431 = vrot.slane %v1430, 4
        %v1432 = vadd.f32 %v1430, %v1431
        %v1433 = vrot.slane %v1432, 2
        %v1434 = vadd.f32 %v1432, %v1433
        %v1435 = vrot.slane %v1434, 1
        %v1436 = vadd.f32 %v1434, %v1435
        %v1437 = vadd.f32 %v1367, %v1436
        %1438 = vst.msk [vmem:[%s394] sm:$0x1] %vm1365, %v1437
        %s1439 = sand.u32 %s161, 1
        %s1440 = scalar_lea.sflag [#allocation3], %s1439
        %s1441 = sand.u32 %s161, 1
        %s1442 = smul.addr %s1441, 64
        %s1443 = scalar_lea.vmem [#allocation2], %s1442
        %s1444 = sand.u32 %s27, 1
        %s1445 = scalar_lea.sflag [#allocation5], %s1444
        %s1446 = sand.u32 %s187, 1
        %s1447 = smul.addr %s1446, 128
        %s1448 = scalar_lea.vmem [#allocation4], %s1447
        %s1449 = sand.u32 %s27, 1
        %s1450 = scalar_lea.sflag [#allocation5], %s1449
        %s1451 = sand.u32 %s213, 1
        %s1452 = scalar_lea.vmem [#allocation6], %s1451
        %p1453 = scmp.lt.s32.totalorder %s31, 1
        %s1454 = scalar_select %p1453, %s31, 1
        %s1455 = scalar_lea.vmem %s8, %s1454
        %p1456 = scmp.lt.s32.totalorder %s31, 1
        %s1457 = scalar_select %p1456, %s31, 1
        %s1458 = scalar_lea.vmem %s9, %s1457
        // Predicated region
        $region45: #{tpu_custom_call.1} parent=39 // pred_check
          %p1459 = pneg %p171
        $region46: #{tpu_custom_call.1} parent=39 // pred_check_branch
          %1461 = sbr.rel (%p1459) target = $region48
        $region47: #{tpu_custom_call.1} parent=39 // pred_region
          %s1462 = smul.u32 16, %s32
          %s1464 = ssub.s32 1024, 1024
          %1465 = vsyncadd %s1440, %s1464
          %s1466 = smul.addr %s31, 32
          %s1467 = sadd.s32 %s1462, %s1466
          %s1468 = smul.addr %s1467, 64
          %s1469 = scalar_lea.hbm %s5, %s1468
          %s1470 = sshll.u32 %s1443, 4
          %s1471 = int_to_ptr.vmem [resolvable:$true] %s1470
          %1476 = dma.vmem_to_hbm [thread:$0]  %s1471, 1024, %s1469, %s1440, 64, 64, 4
        $region48: #{tpu_custom_call.1} parent=39 // pred_fallthru
          _
        // Predicated region
        $region49: #{tpu_custom_call.1} parent=39 // pred_check
          %p1477 = pneg %p197
        $region50: #{tpu_custom_call.1} parent=39 // pred_check_branch
          %1479 = sbr.rel (%p1477) target = $region52
        $region51: #{tpu_custom_call.1} parent=39 // pred_region
          %s1481 = ssub.s32 2048, 2048
          %1482 = vsyncadd %s1445, %s1481
          %s1483 = smul.addr %s31, 16
          %s1484 = smul.addr %s1483, 128
          %s1485 = scalar_lea.hbm %s6, %s1484
          %s1486 = sshll.u32 %s1448, 4
          %s1487 = int_to_ptr.vmem [resolvable:$true] %s1486
          %1492 = dma.vmem_to_hbm [thread:$0]  %s1487, 2048, %s1485, %s1445, 128, 128, 8
        $region52: #{tpu_custom_call.1} parent=39 // pred_fallthru
          _
        // Predicated region
        $region53: #{tpu_custom_call.1} parent=39 // pred_check
          %p1493 = pneg %p223
        $region54: #{tpu_custom_call.1} parent=39 // pred_check_branch
          %1495 = sbr.rel (%p1493) target = $region56
        $region55: #{tpu_custom_call.1} parent=39 // pred_region
          %s1497 = ssub.s32 16, 16
          %1498 = vsyncadd %s1450, %s1497
          %s1499 = smul.addr %s31, 16
          %s1500 = scalar_lea.hbm %s7, %s1499
          %s1502 = sshll.u32 %s1452, 4
          %s1503 = int_to_ptr.vmem [resolvable:$true] %s1502
          %1505 = dma.vmem_to_hbm [thread:$0]  %s1503, 16, %s1500, %s1450
        $region56: #{tpu_custom_call.1} parent=39 // pred_fallthru
          _
        // Predicated region
        $region57: #{tpu_custom_call.1} parent=39 // pred_check
          %p1506 = pneg %p249
        $region58: #{tpu_custom_call.1} parent=39 // pred_check_branch
          %1508 = sbr.rel (%p1506) target = $region60
        $region59: #{tpu_custom_call.1} parent=39 // pred_region
          _
        $region60: #{tpu_custom_call.1} parent=39 // pred_fallthru
          _
        // Predicated region
        $region61: #{tpu_custom_call.1} parent=39 // pred_check
          %p1509 = pneg %p275
        $region62: #{tpu_custom_call.1} parent=39 // pred_check_branch
          %1511 = sbr.rel (%p1509) target = $region64
        $region63: #{tpu_custom_call.1} parent=39 // pred_region
          _
        $region64: #{tpu_custom_call.1} parent=39 // pred_fallthru
          _
      $region40: #{tpu_custom_call.1} parent=5 // pred_fallthru
        _
      %p1512 = scmp.le.s32.totalorder 2, %s22
      // Predicated region
      $region65: #{tpu_custom_call.1} parent=5 // pred_check
        %p1513 = pneg %p1512
      $region66: #{tpu_custom_call.1} parent=5 // pred_check_branch
        %1515 = sbr.rel (%p1513) target = $region68
      $region67: #{tpu_custom_call.1} parent=5 // pred_region
        %s1516 = ssub.s32 %s22, 2
        // Predicated region
        $region69: #{tpu_custom_call.1} parent=67 // pred_check
          %p1517 = pneg %p177
        $region70: #{tpu_custom_call.1} parent=67 // pred_check_branch
          %1519 = sbr.rel (%p1517) target = $region72
        $region71: #{tpu_custom_call.1} parent=67 // pred_region
          %s1520 = sand.u32 %s162, 1
          %s1521 = scalar_lea.sflag [#allocation3], %s1520
          %s1522 = sand.u32 %s162, 1
          %s1523 = smul.addr %s1522, 64
          %s1524 = scalar_lea.vmem [#allocation2], %s1523
          %1525 = dma.done %s1521, 1024
        $region72: #{tpu_custom_call.1} parent=67 // pred_fallthru
          _
        // Predicated region
        $region73: #{tpu_custom_call.1} parent=67 // pred_check
          %p1526 = pneg %p203
        $region74: #{tpu_custom_call.1} parent=67 // pred_check_branch
          %1528 = sbr.rel (%p1526) target = $region76
        $region75: #{tpu_custom_call.1} parent=67 // pred_region
          %s1529 = sand.u32 %s28, 1
          %s1530 = scalar_lea.sflag [#allocation5], %s1529
          %s1531 = sand.u32 %s188, 1
          %s1532 = smul.addr %s1531, 128
          %s1533 = scalar_lea.vmem [#allocation4], %s1532
          %1534 = dma.done %s1530, 2048
        $region76: #{tpu_custom_call.1} parent=67 // pred_fallthru
          _
        // Predicated region
        $region77: #{tpu_custom_call.1} parent=67 // pred_check
          %p1535 = pneg %p229
        $region78: #{tpu_custom_call.1} parent=67 // pred_check_branch
          %1537 = sbr.rel (%p1535) target = $region80
        $region79: #{tpu_custom_call.1} parent=67 // pred_region
          %s1538 = sand.u32 %s28, 1
          %s1539 = scalar_lea.sflag [#allocation5], %s1538
          %s1540 = sand.u32 %s214, 1
          %s1541 = scalar_lea.vmem [#allocation6], %s1540
          %1542 = dma.done %s1539, 16
        $region80: #{tpu_custom_call.1} parent=67 // pred_fallthru
          _
        // Predicated region
        $region81: #{tpu_custom_call.1} parent=67 // pred_check
          %p1543 = pneg %p255
        $region82: #{tpu_custom_call.1} parent=67 // pred_check_branch
          %1545 = sbr.rel (%p1543) target = $region84
        $region83: #{tpu_custom_call.1} parent=67 // pred_region
          %p1546 = scmp.lt.s32.totalorder %s33, 1
          %s1547 = scalar_select %p1546, %s33, 1
          %s1548 = scalar_lea.vmem %s8, %s1547
        $region84: #{tpu_custom_call.1} parent=67 // pred_fallthru
          _
        // Predicated region
        $region85: #{tpu_custom_call.1} parent=67 // pred_check
          %p1549 = pneg %p281
        $region86: #{tpu_custom_call.1} parent=67 // pred_check_branch
          %1551 = sbr.rel (%p1549) target = $region88
        $region87: #{tpu_custom_call.1} parent=67 // pred_region
          %p1552 = scmp.lt.s32.totalorder %s33, 1
          %s1553 = scalar_select %p1552, %s33, 1
          %s1554 = scalar_lea.vmem %s9, %s1553
        $region88: #{tpu_custom_call.1} parent=67 // pred_fallthru
          _
      $region68: #{tpu_custom_call.1} parent=5 // pred_fallthru
        _
    $region6: #{tpu_custom_call.1} parent=1 // loop_footer
      %s26 = sadd.s32 1, %s22
    $region7: #{tpu_custom_call.1} parent=1 // loop_footer_branch
      %21 = sbr.rel target = $region3
    $region8: #{tpu_custom_call.1} parent=1 // loop_exit
      _
    %1555 = vsyncpa [#allocation3], 1
    %s1556 = scalar_lea.sflag [#allocation3], 1
    %1557 = vsyncpa %s1556, 1
    %1558 = vsyncpa [#allocation5], 1
    %s1559 = scalar_lea.sflag [#allocation5], 1
    %1560 = vsyncpa %s1559, 1

</llo_original>
